<compile_context>
chip_gen: v6e
topology: v6e:2x2x1
jax: 0.10.0
libtpu: 0.0.40
codegen_flags: <defaults>
</compile_context>

<pallas_src>
import math

import jax
import jax.numpy as jnp
from jax.experimental import pallas as pl
from jax.experimental.pallas import tpu as pltpu

F32 = jnp.float32
BF16 = jnp.bfloat16


# ----------------------------------------------------------------------------
# slab layout: shared by the host-side packer and the kernel (static offsets)
# ----------------------------------------------------------------------------
def _slab_layout(E, F, C, CAT):
    def up16(v):
        return -(-v // 16) * 16

    w_entries = [
        ("te_w1", C, E),            # TextEmb_fc layer 1
        ("te_w2", E, F),            # TextEmb_fc layer 2
        ("w_ca1", 2 * E, 2 * E),    # [fc_alpha.l1 | conf_fc.l1]
        ("w_ca2", 2 * E, F + 1),    # blkdiag(fc_alpha.l2, conf_fc.l2)
        ("w_so1", E + F, 2 * E),    # [fc_s.l1 | fc_o.l1]
        ("w_so2", 2 * E, 2 * F),    # blkdiag(fc_s.l2, fc_o.l2)
        ("w_gi4", F, 4 * F),        # [W_ir | W_iz | W_in | 0]
        ("w_gh4", F, 4 * F),        # [W_hr | W_hz | 0 | W_hn]
        ("tc_w1", F, F),            # traj_classifier layers
        ("tc_w2", F, F),
        ("tc_w3", F, CAT),
    ]
    w_lay, off, max_n = {}, 0, 0
    for name, k, n in w_entries:
        w_lay[name] = (off, k, n)
        off += up16(k)
        max_n = max(max_n, n)
    w_shape = (up16(off), -(-max_n // 128) * 128)

    b_entries = [
        ("te_b1", E), ("te_b2", F), ("b_ca1", 2 * E), ("b_ca2", F + 1),
        ("b_so1", 2 * E), ("b_so2", 2 * F), ("b_g4", 4 * F),
        ("tc_b1", F), ("tc_b2", F), ("tc_b3", CAT),
    ]
    b_lay = {name: (i, n) for i, (name, n) in enumerate(b_entries)}
    b_shape = (-(-len(b_entries) // 8) * 8, w_shape[1])
    return w_lay, w_shape, b_lay, b_shape


# ----------------------------------------------------------------------------
# in-kernel helpers
# ----------------------------------------------------------------------------
def _mm(a, b):
    """MXU matmul: bf16 operands, f32 accumulation."""
    return jnp.dot(a.astype(BF16), b.astype(BF16), preferred_element_type=F32)


def _mm_t(a, b):
    """a @ b.T (contract last dims), bf16 operands, f32 accumulation."""
    return jax.lax.dot_general(
        a.astype(BF16), b.astype(BF16),
        dimension_numbers=(((1,), (1,)), ((), ())),
        preferred_element_type=F32)


def _mlp2(x, w1, b1, w2, b2):
    """2-layer MLP: Linear -> ReLU -> Linear (weights stored (in, out))."""
    h = jnp.maximum(_mm(x, w1) + b1, 0.0)
    return _mm(h, w2) + b2


def _row_normalize(x, eps=1e-12):
    """F.normalize: x / max(||x||_2, eps), via rsqrt on the EUP."""
    ssq = jnp.sum(x * x, axis=-1, keepdims=True)
    return x * jax.lax.rsqrt(jnp.maximum(ssq, eps * eps))


def _softmax(x):
    m = jnp.max(x, axis=-1, keepdims=True)
    e = jnp.exp(x - m)
    return e * pl.reciprocal(jnp.sum(e, axis=-1, keepdims=True), approx=True)


# ----------------------------------------------------------------------------
# fused kernel: TextEmb_fc + v_RAIM (1 iter, is_conf=True) + traj_classifier
# ----------------------------------------------------------------------------
def cross_alignment_kernel(x_ref, pred_ref, w_ref, b_ref, cls_ref, node_ref):
    N, E = x_ref.shape
    P, C = pred_ref.shape
    F_DIM = node_ref.shape[1]
    CAT = cls_ref.shape[1]
    NN = N * N
    w_lay, _, b_lay, _ = _slab_layout(E, F_DIM, C, CAT)

    def W(name, rows=None):
        off, k, n = w_lay[name]
        if rows is not None:
            r0, r1 = rows
            return w_ref[off + r0:off + r1, 0:n]
        return w_ref[off:off + k, 0:n]

    def B(name):
        row, n = b_lay[name]
        return b_ref[row:row + 1, 0:n]

    x = x_ref[...]                                                # (N, E) f32
    x_bf = x.astype(BF16)

    # --- PredNameEmb = F.normalize(TextEmb_fc(raw)); row 0 / rows 1: --------
    pe = _row_normalize(_mlp2(pred_ref[...], W("te_w1"), B("te_b1"),
                              W("te_w2"), B("te_b2")))            # (P, F)
    pred0 = pe[0:1, :]                                            # (1, F)
    pred1 = pe[1:, :]                                             # (P-1, F)

    # --- off-diagonal pair mask, built in-kernel -----------------------------
    row_id = jax.lax.broadcasted_iota(jnp.int32, (N, N), 0)
    col_id = jax.lax.broadcasted_iota(jnp.int32, (N, N), 1)
    mask3 = (row_id != col_id).astype(F32)[:, :, None]            # (N, N, 1)

    # --- fused fc_alpha | conf_fc: first layer split, per-node halves hoisted
    h_i = _mm(x_bf, W("w_ca1", (0, E)))                           # x_i half (N, 2E)
    h_j = _mm(x_bf, W("w_ca1", (E, 2 * E)))                       # x_j half (N, 2E)
    h1 = jnp.maximum(h_i[:, None, :] + h_j[None, :, :] + B("b_ca1"), 0.0)
    ca = _mm(h1.reshape(NN, 2 * E), W("w_ca2")) + B("b_ca2")      # (NN, F+1)
    alpha = ca[:, :F_DIM]                                         # fc_alpha(con_x)
    conf = jax.nn.sigmoid(ca[:, F_DIM:F_DIM + 1])                 # conf_scores (NN,1)

    # --- attention over predicate name embeddings ---------------------------
    attn = _softmax(_mm_t(alpha, pred1) * (1.0 / math.sqrt(F_DIM)))   # (NN, P-1)
    # cat([1-conf, conf*attn]) @ PredNameEmb == (1-conf)*pred0 + conf*(attn@pred1)
    attn_pred = (1.0 - conf) * pred0 + conf * _mm(attn, pred1)        # (NN, F)

    # --- conf_scores_norm = F.normalize(conf_scores, dim=1); mask after -----
    conf3 = conf.reshape(N, N, 1)
    ssq = jnp.sum(conf3 * conf3, axis=1, keepdims=True)           # (N,1,1)
    conf_n3 = conf3 * jax.lax.rsqrt(jnp.maximum(ssq, 1e-24))
    w_pair = (conf_n3 * mask3).reshape(NN, 1)                     # zero i == j pairs

    # --- fused fc_s | fc_o on [x_j, attn_pred]; x_j half hoisted ------------
    h_xc = _mm(x_bf, W("w_so1", (0, E)))                          # (N, 2E)
    h_ap = _mm(attn_pred, W("w_so1", (E, E + F_DIM)))             # (NN, 2E)
    h_so = jnp.maximum(h_ap.reshape(N, N, 2 * E)
                       + h_xc[None, :, :] + B("b_so1"), 0.0)      # (N, N, 2E)
    so = _mm(h_so.reshape(NN, 2 * E), W("w_so2")) + B("b_so2")    # (NN, 2F)
    scaled3 = (so * w_pair).reshape(N, N, 2 * F_DIM)              # (N, N, 2F)
    sum_j = jnp.sum(scaled3, axis=1)                              # (N, 2F)
    sum_i = jnp.sum(scaled3, axis=0)                              # (N, 2F)
    # memory[i] = sum_j fc_s-contrib[i,j] + sum_a fc_o-contrib[a,i]
    mem = sum_j[:, :F_DIM] + sum_i[:, F_DIM:]                     # (N, F)

    # --- single-step GRU (PyTorch gate order r, z, n); input = x, h0 = mem --
    g = _mm(x_bf, W("w_gi4")) + _mm(mem, W("w_gh4")) + B("b_g4")  # (N, 4F)
    r = jax.nn.sigmoid(g[:, :F_DIM])
    z = jax.nn.sigmoid(g[:, F_DIM:2 * F_DIM])
    n = jnp.tanh(g[:, 2 * F_DIM:3 * F_DIM] + r * g[:, 3 * F_DIM:4 * F_DIM])
    h_new = (1.0 - z) * n + z * mem
    node_ref[...] = h_new                                         # enti_node_1

    # --- traj_classifier: 3-layer MLP + sigmoid ------------------------------
    h = jnp.maximum(_mm(h_new, W("tc_w1")) + B("tc_b1"), 0.0)
    h = jnp.maximum(_mm(h, W("tc_w2")) + B("tc_b2"), 0.0)
    cls_ref[...] = jax.nn.sigmoid(_mm(h, W("tc_w3")) + B("tc_b3"))


# ----------------------------------------------------------------------------
# parameters: deterministic synthetic init (PyTorch Linear layout transposed to
# (in, out)), packed into one bf16 weight slab + one f32 bias slab.
# ----------------------------------------------------------------------------
def init_params(key, enti_dim, concept_dim, ffn_dim, n_pred, cat_num):
    assert enti_dim == ffn_dim, "module assumes enti_dim == ffn_dim"
    E, F_, C = enti_dim, ffn_dim, concept_dim
    keys = iter(jax.random.split(key, 64))

    def lin(n_in, n_out):
        kw, kb = jax.random.split(next(keys))
        s = 1.0 / math.sqrt(n_in)
        return (jax.random.uniform(kw, (n_in, n_out), F32, minval=-s, maxval=s),
                jax.random.uniform(kb, (1, n_out), F32, minval=-s, maxval=s))

    # raw predicate concept embeddings (stand-in for np.load(PredNameEmb_path))
    pred_raw = jax.random.normal(next(keys), (n_pred, C), F32)

    # TextEmb_fc = MLP(concept_dim, enti_dim, ffn_dim, 2)
    te_w1, te_b1 = lin(C, E)
    te_w2, te_b2 = lin(E, F_)

    # v_RAIM.fc_alpha (2E->E->F) and conf_fc (2E->E->1), packed.
    wa1, ba1 = lin(2 * E, E); wc1, bc1 = lin(2 * E, E)
    wa2, ba2 = lin(E, F_);    wc2, bc2 = lin(E, 1)
    w_ca1 = jnp.concatenate([wa1, wc1], axis=1)                       # (2E, 2E)
    b_ca1 = jnp.concatenate([ba1, bc1], axis=1)                       # (1, 2E)
    w_ca2 = jnp.concatenate(
        [jnp.concatenate([wa2, jnp.zeros((E, 1), F32)], axis=1),
         jnp.concatenate([jnp.zeros((E, F_), F32), wc2], axis=1)], axis=0)
    b_ca2 = jnp.concatenate([ba2, bc2], axis=1)                       # (1, F+1)

    # v_RAIM.fc_s / fc_o (2E->E->F), packed the same way.
    ws1, bs1 = lin(2 * E, E); wo1, bo1 = lin(2 * E, E)
    ws2, bs2 = lin(E, F_);    wo2, bo2 = lin(E, F_)
    zEF = jnp.zeros((E, F_), F32)
    w_so1 = jnp.concatenate([ws1, wo1], axis=1)                       # (E+F, 2E)
    b_so1 = jnp.concatenate([bs1, bo1], axis=1)                       # (1, 2E)
    w_so2 = jnp.concatenate(
        [jnp.concatenate([ws2, zEF], axis=1),
         jnp.concatenate([zEF, wo2], axis=1)], axis=0)                # (2E, 2F)
    b_so2 = jnp.concatenate([bs2, bo2], axis=1)                       # (1, 2F)

    # v_RAIM.gru = nn.GRU(F, F, 1): gates packed as [r | z | n_i | n_h].
    wir, bir = lin(F_, F_); wiz, biz = lin(F_, F_); win, bin_ = lin(F_, F_)
    whr, bhr = lin(F_, F_); whz, bhz = lin(F_, F_); whn, bhn = lin(F_, F_)
    zFF = jnp.zeros((F_, F_), F32)
    w_gi4 = jnp.concatenate([wir, wiz, win, zFF], axis=1)             # (F, 4F)
    w_gh4 = jnp.concatenate([whr, whz, zFF, whn], axis=1)             # (F, 4F)
    b_g4 = jnp.concatenate([bir + bhr, biz + bhz, bin_, bhn], axis=1)  # (1, 4F)

    # traj_classifier = MLP(F, F, cat_num, 3) + Sigmoid
    tc_w1, tc_b1 = lin(F_, F_)
    tc_w2, tc_b2 = lin(F_, F_)
    tc_w3, tc_b3 = lin(F_, cat_num)

    # --- pack into slabs -----------------------------------------------------
    w_lay, w_shape, b_lay, b_shape = _slab_layout(E, F_, C, cat_num)
    weights = dict(te_w1=te_w1, te_w2=te_w2, w_ca1=w_ca1, w_ca2=w_ca2,
                   w_so1=w_so1, w_so2=w_so2, w_gi4=w_gi4, w_gh4=w_gh4,
                   tc_w1=tc_w1, tc_w2=tc_w2, tc_w3=tc_w3)
    biases = dict(te_b1=te_b1, te_b2=te_b2, b_ca1=b_ca1, b_ca2=b_ca2,
                  b_so1=b_so1, b_so2=b_so2, b_g4=b_g4,
                  tc_b1=tc_b1, tc_b2=tc_b2, tc_b3=tc_b3)

    w_slab = jnp.zeros(w_shape, F32)
    for name, mat in weights.items():
        off, k, n = w_lay[name]
        assert mat.shape == (k, n), (name, mat.shape, (k, n))
        w_slab = w_slab.at[off:off + k, 0:n].set(mat)
    w_slab = w_slab.astype(BF16)

    b_slab = jnp.zeros(b_shape, F32)
    for name, vec in biases.items():
        row, n = b_lay[name]
        assert vec.shape == (1, n), (name, vec.shape, (1, n))
        b_slab = b_slab.at[row, 0:n].set(vec.reshape(n))

    return {"pred_raw": pred_raw, "w_slab": w_slab, "b_slab": b_slab,
            "ffn_dim": F_, "cat_num": cat_num}


# ----------------------------------------------------------------------------
# CrossAlignment.forward (is_train=False path), one pallas_call, 4 input DMAs.
# ----------------------------------------------------------------------------
def cross_alignment_forward(enti_node, params):
    N, _ = enti_node.shape
    F_DIM = params["ffn_dim"]
    CAT = params["cat_num"]

    cls_label, enti_node_1 = pl.pallas_call(
        cross_alignment_kernel,
        out_shape=(jax.ShapeDtypeStruct((N, CAT), F32),
                   jax.ShapeDtypeStruct((N, F_DIM), F32)),
        in_specs=[pl.BlockSpec(memory_space=pltpu.MemorySpace.VMEM)] * 4,
        out_specs=(pl.BlockSpec(memory_space=pltpu.MemorySpace.VMEM),
                   pl.BlockSpec(memory_space=pltpu.MemorySpace.VMEM)),
    )(enti_node, params["pred_raw"], params["w_slab"], params["b_slab"])
    return cls_label, enti_node_1


# ----------------------------------------------------------------------------
if __name__ == "__main__":
    N = 8             # number of entity nodes
    ENTI_DIM = 32     # enti_dim
    CONCEPT_DIM = 64  # concept_dim
    FFN_DIM = 32      # ffn_dim (module assumes enti_dim == ffn_dim)
    N_PRED = 9        # predicate vocabulary size (row 0 = background)
    CAT_NUM = 16      # len(vidvrd_CatName2Id) stand-in

    key = jax.random.PRNGKey(0)
    k_inp, k_par = jax.random.split(key)
    enti_node = jax.random.normal(k_inp, (N, ENTI_DIM), F32)
    params = init_params(k_par, ENTI_DIM, CONCEPT_DIM, FFN_DIM, N_PRED, CAT_NUM)

    cls_label, enti_node_1 = cross_alignment_forward(enti_node, params)
    jax.block_until_ready((cls_label, enti_node_1))

    assert cls_label.shape == (N, CAT_NUM)
    assert enti_node_1.shape == (N, FFN_DIM)
    assert bool(jnp.all(jnp.isfinite(cls_label)))
    assert bool(jnp.all(jnp.isfinite(enti_node_1)))
    print("KERNEL_OK")
</pallas_src>

<mosaic_0001>
module attributes {stable_mosaic.version = 11 : i64} {
  func.func @cross_alignment_kernel(%arg0: memref<8x32xf32, #tpu.memory_space<vmem>>, %arg1: memref<9x64xf32, #tpu.memory_space<vmem>>, %arg2: memref<512x128xbf16, #tpu.memory_space<vmem>>, %arg3: memref<16x128xf32, #tpu.memory_space<vmem>>, %arg4: memref<8x16xf32, #tpu.memory_space<vmem>>, %arg5: memref<8x32xf32, #tpu.memory_space<vmem>>) attributes {dimension_semantics = [], scalar_prefetch = 0 : i64, scratch_operands = 0 : i64, tpu.core_type = #tpu.core_type<tc>} {
    %c0 = arith.constant 0 : index
    %c0_0 = arith.constant 0 : index
    %0 = vector.load %arg0[%c0, %c0_0] : memref<8x32xf32, #tpu.memory_space<vmem>>, vector<8x32xf32>
    %1 = arith.truncf %0 : vector<8x32xf32> to vector<8x32xbf16>
    %c0_1 = arith.constant 0 : index
    %c0_2 = arith.constant 0 : index
    %2 = vector.load %arg1[%c0_1, %c0_2] : memref<9x64xf32, #tpu.memory_space<vmem>>, vector<9x64xf32>
    %c0_3 = arith.constant 0 : index
    %c0_4 = arith.constant 0 : index
    %3 = vector.load %arg2[%c0_3, %c0_4] : memref<512x128xbf16, #tpu.memory_space<vmem>>, vector<64x32xbf16>
    %c0_5 = arith.constant 0 : index
    %c0_6 = arith.constant 0 : index
    %4 = vector.load %arg3[%c0_5, %c0_6] : memref<16x128xf32, #tpu.memory_space<vmem>>, vector<1x32xf32>
    %c64 = arith.constant 64 : index
    %c0_7 = arith.constant 0 : index
    %5 = vector.load %arg2[%c64, %c0_7] : memref<512x128xbf16, #tpu.memory_space<vmem>>, vector<32x32xbf16>
    %c1 = arith.constant 1 : index
    %c0_8 = arith.constant 0 : index
    %6 = vector.load %arg3[%c1, %c0_8] : memref<16x128xf32, #tpu.memory_space<vmem>>, vector<1x32xf32>
    %7 = arith.truncf %2 : vector<9x64xf32> to vector<9x64xbf16>
    %cst = arith.constant dense<0.000000e+00> : vector<9x32xf32>
    %8 = tpu.matmul %7, %3, %cst {dimension_numbers = #tpu.dot_dimension_numbers<[1], [0], [0], [1], [0, 0, 1, 1], [], []>} : vector<9x64xbf16>, vector<64x32xbf16>, vector<9x32xf32> -> vector<9x32xf32>
    %9 = vector.broadcast %4 : vector<1x32xf32> to vector<9x32xf32>
    %10 = arith.addf %8, %9 : vector<9x32xf32>
    %cst_9 = arith.constant 0.000000e+00 : f32
    %11 = vector.broadcast %cst_9 : f32 to vector<9x32xf32>
    %12 = arith.maximumf %10, %11 : vector<9x32xf32>
    %13 = arith.truncf %12 : vector<9x32xf32> to vector<9x32xbf16>
    %cst_10 = arith.constant dense<0.000000e+00> : vector<9x32xf32>
    %14 = tpu.matmul %13, %5, %cst_10 {dimension_numbers = #tpu.dot_dimension_numbers<[1], [0], [0], [1], [0, 0, 1, 1], [], []>} : vector<9x32xbf16>, vector<32x32xbf16>, vector<9x32xf32> -> vector<9x32xf32>
    %15 = vector.broadcast %6 : vector<1x32xf32> to vector<9x32xf32>
    %16 = arith.addf %14, %15 : vector<9x32xf32>
    %17 = arith.mulf %16, %16 : vector<9x32xf32>
    %cst_11 = arith.constant dense<0.000000e+00> : vector<9xf32>
    %18 = vector.multi_reduction <add>, %17, %cst_11 [1] : vector<9x32xf32> to vector<9xf32>
    %19 = vector.shape_cast %18 : vector<9xf32> to vector<9x1xf32>
    %cst_12 = arith.constant 1.000000e-24 : f32
    %20 = vector.broadcast %cst_12 : f32 to vector<9x1xf32>
    %21 = arith.maximumf %19, %20 : vector<9x1xf32>
    %22 = math.rsqrt %21 : vector<9x1xf32>
    %23 = vector.broadcast %22 : vector<9x1xf32> to vector<9x32xf32>
    %24 = arith.mulf %16, %23 : vector<9x32xf32>
    %25 = vector.extract_strided_slice %24 {offsets = [0, 0], sizes = [1, 32], strides = [1, 1]} : vector<9x32xf32> to vector<1x32xf32>
    %26 = vector.extract_strided_slice %24 {offsets = [1, 0], sizes = [8, 32], strides = [1, 1]} : vector<9x32xf32> to vector<8x32xf32>
    %27 = tpu.iota {dimensions = array<i32: 0>} : vector<8x8xi32>
    %28 = tpu.iota {dimensions = array<i32: 1>} : vector<8x8xi32>
    %29 = arith.cmpi ne, %27, %28 : vector<8x8xi32>
    %30 = arith.extui %29 : vector<8x8xi1> to vector<8x8xi32>
    %31 = arith.sitofp %30 : vector<8x8xi32> to vector<8x8xf32>
    %32 = vector.shape_cast %31 : vector<8x8xf32> to vector<8x8x1xf32>
    %c96 = arith.constant 96 : index
    %c0_13 = arith.constant 0 : index
    %33 = vector.load %arg2[%c96, %c0_13] : memref<512x128xbf16, #tpu.memory_space<vmem>>, vector<32x64xbf16>
    %cst_14 = arith.constant dense<0.000000e+00> : vector<8x64xf32>
    %34 = tpu.matmul %1, %33, %cst_14 {dimension_numbers = #tpu.dot_dimension_numbers<[1], [0], [0], [1], [0, 0, 1, 1], [], []>} : vector<8x32xbf16>, vector<32x64xbf16>, vector<8x64xf32> -> vector<8x64xf32>
    %c128 = arith.constant 128 : index
    %c0_15 = arith.constant 0 : index
    %35 = vector.load %arg2[%c128, %c0_15] : memref<512x128xbf16, #tpu.memory_space<vmem>>, vector<32x64xbf16>
    %cst_16 = arith.constant dense<0.000000e+00> : vector<8x64xf32>
    %36 = tpu.matmul %1, %35, %cst_16 {dimension_numbers = #tpu.dot_dimension_numbers<[1], [0], [0], [1], [0, 0, 1, 1], [], []>} : vector<8x32xbf16>, vector<32x64xbf16>, vector<8x64xf32> -> vector<8x64xf32>
    %37 = vector.shape_cast %34 : vector<8x64xf32> to vector<8x1x64xf32>
    %38 = vector.shape_cast %36 : vector<8x64xf32> to vector<1x8x64xf32>
    %39 = vector.broadcast %37 : vector<8x1x64xf32> to vector<8x8x64xf32>
    %40 = vector.broadcast %38 : vector<1x8x64xf32> to vector<8x8x64xf32>
    %41 = arith.addf %39, %40 : vector<8x8x64xf32>
    %c2 = arith.constant 2 : index
    %c0_17 = arith.constant 0 : index
    %42 = vector.load %arg3[%c2, %c0_17] : memref<16x128xf32, #tpu.memory_space<vmem>>, vector<1x64xf32>
    %43 = vector.shape_cast %42 : vector<1x64xf32> to vector<1x1x64xf32>
    %44 = vector.broadcast %43 : vector<1x1x64xf32> to vector<8x8x64xf32>
    %45 = arith.addf %41, %44 : vector<8x8x64xf32>
    %cst_18 = arith.constant 0.000000e+00 : f32
    %46 = vector.broadcast %cst_18 : f32 to vector<8x8x64xf32>
    %47 = arith.maximumf %45, %46 : vector<8x8x64xf32>
    %48 = vector.shape_cast %47 : vector<8x8x64xf32> to vector<64x64xf32>
    %c160 = arith.constant 160 : index
    %c0_19 = arith.constant 0 : index
    %49 = vector.load %arg2[%c160, %c0_19] : memref<512x128xbf16, #tpu.memory_space<vmem>>, vector<64x33xbf16>
    %50 = arith.truncf %48 : vector<64x64xf32> to vector<64x64xbf16>
    %cst_20 = arith.constant dense<0.000000e+00> : vector<64x33xf32>
    %51 = tpu.matmul %50, %49, %cst_20 {dimension_numbers = #tpu.dot_dimension_numbers<[1], [0], [0], [1], [0, 0, 1, 1], [], []>} : vector<64x64xbf16>, vector<64x33xbf16>, vector<64x33xf32> -> vector<64x33xf32>
    %c3 = arith.constant 3 : index
    %c0_21 = arith.constant 0 : index
    %52 = vector.load %arg3[%c3, %c0_21] : memref<16x128xf32, #tpu.memory_space<vmem>>, vector<1x33xf32>
    %53 = vector.broadcast %52 : vector<1x33xf32> to vector<64x33xf32>
    %54 = arith.addf %51, %53 : vector<64x33xf32>
    %55 = vector.extract_strided_slice %54 {offsets = [0, 0], sizes = [64, 32], strides = [1, 1]} : vector<64x33xf32> to vector<64x32xf32>
    %56 = vector.extract_strided_slice %54 {offsets = [0, 32], sizes = [64, 1], strides = [1, 1]} : vector<64x33xf32> to vector<64x1xf32>
    %57 = arith.negf %56 : vector<64x1xf32>
    %58 = math.exp %57 : vector<64x1xf32>
    %cst_22 = arith.constant 1.000000e+00 : f32
    %59 = vector.broadcast %cst_22 : f32 to vector<64x1xf32>
    %60 = arith.addf %59, %58 : vector<64x1xf32>
    %61 = arith.divf %59, %60 : vector<64x1xf32>
    %62 = arith.truncf %55 : vector<64x32xf32> to vector<64x32xbf16>
    %63 = arith.truncf %26 : vector<8x32xf32> to vector<8x32xbf16>
    %cst_23 = arith.constant dense<0.000000e+00> : vector<64x8xf32>
    %64 = tpu.matmul %62, %63, %cst_23 {dimension_numbers = #tpu.dot_dimension_numbers<[1], [1], [0], [0], [0, 0, 1, 0], [], []>} : vector<64x32xbf16>, vector<8x32xbf16>, vector<64x8xf32> -> vector<64x8xf32>
    %cst_24 = arith.constant 0.176776692 : f32
    %65 = vector.broadcast %cst_24 : f32 to vector<64x8xf32>
    %66 = arith.mulf %64, %65 : vector<64x8xf32>
    %cst_25 = arith.constant dense<0xFF800000> : vector<64xf32>
    %67 = vector.multi_reduction <maximumf>, %66, %cst_25 [1] : vector<64x8xf32> to vector<64xf32>
    %68 = vector.shape_cast %67 : vector<64xf32> to vector<64x1xf32>
    %69 = vector.broadcast %68 : vector<64x1xf32> to vector<64x8xf32>
    %70 = arith.subf %66, %69 : vector<64x8xf32>
    %71 = math.exp %70 : vector<64x8xf32>
    %cst_26 = arith.constant dense<0.000000e+00> : vector<64xf32>
    %72 = vector.multi_reduction <add>, %71, %cst_26 [1] : vector<64x8xf32> to vector<64xf32>
    %73 = vector.shape_cast %72 : vector<64xf32> to vector<64x1xf32>
    %74 = tpu.reciprocal %73 {approx = true} : vector<64x1xf32> -> vector<64x1xf32>
    %75 = vector.broadcast %74 : vector<64x1xf32> to vector<64x8xf32>
    %76 = arith.mulf %71, %75 : vector<64x8xf32>
    %cst_27 = arith.constant 1.000000e+00 : f32
    %77 = vector.broadcast %cst_27 : f32 to vector<64x1xf32>
    %78 = arith.subf %77, %61 : vector<64x1xf32>
    %79 = vector.broadcast %78 : vector<64x1xf32> to vector<64x32xf32>
    %80 = vector.broadcast %25 : vector<1x32xf32> to vector<64x32xf32>
    %81 = arith.mulf %79, %80 : vector<64x32xf32>
    %82 = arith.truncf %76 : vector<64x8xf32> to vector<64x8xbf16>
    %83 = arith.truncf %26 : vector<8x32xf32> to vector<8x32xbf16>
    %cst_28 = arith.constant dense<0.000000e+00> : vector<64x32xf32>
    %84 = tpu.matmul %82, %83, %cst_28 {dimension_numbers = #tpu.dot_dimension_numbers<[1], [0], [0], [1], [0, 0, 1, 1], [], []>} : vector<64x8xbf16>, vector<8x32xbf16>, vector<64x32xf32> -> vector<64x32xf32>
    %85 = vector.broadcast %61 : vector<64x1xf32> to vector<64x32xf32>
    %86 = arith.mulf %85, %84 : vector<64x32xf32>
    %87 = arith.addf %81, %86 : vector<64x32xf32>
    %88 = vector.shape_cast %61 : vector<64x1xf32> to vector<8x8x1xf32>
    %89 = arith.mulf %88, %88 : vector<8x8x1xf32>
    %cst_29 = arith.constant dense<0.000000e+00> : vector<8x1xf32>
    %90 = vector.multi_reduction <add>, %89, %cst_29 [1] : vector<8x8x1xf32> to vector<8x1xf32>
    %91 = vector.shape_cast %90 : vector<8x1xf32> to vector<8x1x1xf32>
    %cst_30 = arith.constant 1.000000e-24 : f32
    %92 = vector.broadcast %cst_30 : f32 to vector<8x1x1xf32>
    %93 = arith.maximumf %91, %92 : vector<8x1x1xf32>
    %94 = math.rsqrt %93 : vector<8x1x1xf32>
    %95 = vector.broadcast %94 : vector<8x1x1xf32> to vector<8x8x1xf32>
    %96 = arith.mulf %88, %95 : vector<8x8x1xf32>
    %97 = arith.mulf %96, %32 : vector<8x8x1xf32>
    %98 = vector.shape_cast %97 : vector<8x8x1xf32> to vector<64x1xf32>
    %c224 = arith.constant 224 : index
    %c0_31 = arith.constant 0 : index
    %99 = vector.load %arg2[%c224, %c0_31] : memref<512x128xbf16, #tpu.memory_space<vmem>>, vector<32x64xbf16>
    %cst_32 = arith.constant dense<0.000000e+00> : vector<8x64xf32>
    %100 = tpu.matmul %1, %99, %cst_32 {dimension_numbers = #tpu.dot_dimension_numbers<[1], [0], [0], [1], [0, 0, 1, 1], [], []>} : vector<8x32xbf16>, vector<32x64xbf16>, vector<8x64xf32> -> vector<8x64xf32>
    %c256 = arith.constant 256 : index
    %c0_33 = arith.constant 0 : index
    %101 = vector.load %arg2[%c256, %c0_33] : memref<512x128xbf16, #tpu.memory_space<vmem>>, vector<32x64xbf16>
    %102 = arith.truncf %87 : vector<64x32xf32> to vector<64x32xbf16>
    %cst_34 = arith.constant dense<0.000000e+00> : vector<64x64xf32>
    %103 = tpu.matmul %102, %101, %cst_34 {dimension_numbers = #tpu.dot_dimension_numbers<[1], [0], [0], [1], [0, 0, 1, 1], [], []>} : vector<64x32xbf16>, vector<32x64xbf16>, vector<64x64xf32> -> vector<64x64xf32>
    %104 = vector.shape_cast %103 : vector<64x64xf32> to vector<8x8x64xf32>
    %105 = vector.shape_cast %100 : vector<8x64xf32> to vector<1x8x64xf32>
    %106 = vector.broadcast %105 : vector<1x8x64xf32> to vector<8x8x64xf32>
    %107 = arith.addf %104, %106 : vector<8x8x64xf32>
    %c4 = arith.constant 4 : index
    %c0_35 = arith.constant 0 : index
    %108 = vector.load %arg3[%c4, %c0_35] : memref<16x128xf32, #tpu.memory_space<vmem>>, vector<1x64xf32>
    %109 = vector.shape_cast %108 : vector<1x64xf32> to vector<1x1x64xf32>
    %110 = vector.broadcast %109 : vector<1x1x64xf32> to vector<8x8x64xf32>
    %111 = arith.addf %107, %110 : vector<8x8x64xf32>
    %cst_36 = arith.constant 0.000000e+00 : f32
    %112 = vector.broadcast %cst_36 : f32 to vector<8x8x64xf32>
    %113 = arith.maximumf %111, %112 : vector<8x8x64xf32>
    %114 = vector.shape_cast %113 : vector<8x8x64xf32> to vector<64x64xf32>
    %c288 = arith.constant 288 : index
    %c0_37 = arith.constant 0 : index
    %115 = vector.load %arg2[%c288, %c0_37] : memref<512x128xbf16, #tpu.memory_space<vmem>>, vector<64x64xbf16>
    %116 = arith.truncf %114 : vector<64x64xf32> to vector<64x64xbf16>
    %cst_38 = arith.constant dense<0.000000e+00> : vector<64x64xf32>
    %117 = tpu.matmul %116, %115, %cst_38 {dimension_numbers = #tpu.dot_dimension_numbers<[1], [0], [0], [1], [0, 0, 1, 1], [], []>} : vector<64x64xbf16>, vector<64x64xbf16>, vector<64x64xf32> -> vector<64x64xf32>
    %c5 = arith.constant 5 : index
    %c0_39 = arith.constant 0 : index
    %118 = vector.load %arg3[%c5, %c0_39] : memref<16x128xf32, #tpu.memory_space<vmem>>, vector<1x64xf32>
    %119 = vector.broadcast %118 : vector<1x64xf32> to vector<64x64xf32>
    %120 = arith.addf %117, %119 : vector<64x64xf32>
    %121 = vector.broadcast %98 : vector<64x1xf32> to vector<64x64xf32>
    %122 = arith.mulf %120, %121 : vector<64x64xf32>
    %123 = vector.shape_cast %122 : vector<64x64xf32> to vector<8x8x64xf32>
    %cst_40 = arith.constant dense<0.000000e+00> : vector<8x64xf32>
    %124 = vector.multi_reduction <add>, %123, %cst_40 [1] : vector<8x8x64xf32> to vector<8x64xf32>
    %cst_41 = arith.constant dense<0.000000e+00> : vector<8x64xf32>
    %125 = vector.multi_reduction <add>, %123, %cst_41 [0] : vector<8x8x64xf32> to vector<8x64xf32>
    %126 = vector.extract_strided_slice %124 {offsets = [0, 0], sizes = [8, 32], strides = [1, 1]} : vector<8x64xf32> to vector<8x32xf32>
    %127 = vector.extract_strided_slice %125 {offsets = [0, 32], sizes = [8, 32], strides = [1, 1]} : vector<8x64xf32> to vector<8x32xf32>
    %128 = arith.addf %126, %127 : vector<8x32xf32>
    %c352 = arith.constant 352 : index
    %c0_42 = arith.constant 0 : index
    %129 = vector.load %arg2[%c352, %c0_42] : memref<512x128xbf16, #tpu.memory_space<vmem>>, vector<32x128xbf16>
    %cst_43 = arith.constant dense<0.000000e+00> : vector<8x128xf32>
    %130 = tpu.matmul %1, %129, %cst_43 {dimension_numbers = #tpu.dot_dimension_numbers<[1], [0], [0], [1], [0, 0, 1, 1], [], []>} : vector<8x32xbf16>, vector<32x128xbf16>, vector<8x128xf32> -> vector<8x128xf32>
    %c384 = arith.constant 384 : index
    %c0_44 = arith.constant 0 : index
    %131 = vector.load %arg2[%c384, %c0_44] : memref<512x128xbf16, #tpu.memory_space<vmem>>, vector<32x128xbf16>
    %132 = arith.truncf %128 : vector<8x32xf32> to vector<8x32xbf16>
    %cst_45 = arith.constant dense<0.000000e+00> : vector<8x128xf32>
    %133 = tpu.matmul %132, %131, %cst_45 {dimension_numbers = #tpu.dot_dimension_numbers<[1], [0], [0], [1], [0, 0, 1, 1], [], []>} : vector<8x32xbf16>, vector<32x128xbf16>, vector<8x128xf32> -> vector<8x128xf32>
    %134 = arith.addf %130, %133 : vector<8x128xf32>
    %c6 = arith.constant 6 : index
    %c0_46 = arith.constant 0 : index
    %135 = vector.load %arg3[%c6, %c0_46] : memref<16x128xf32, #tpu.memory_space<vmem>>, vector<1x128xf32>
    %136 = vector.broadcast %135 : vector<1x128xf32> to vector<8x128xf32>
    %137 = arith.addf %134, %136 : vector<8x128xf32>
    %138 = vector.extract_strided_slice %137 {offsets = [0, 0], sizes = [8, 32], strides = [1, 1]} : vector<8x128xf32> to vector<8x32xf32>
    %139 = arith.negf %138 : vector<8x32xf32>
    %140 = math.exp %139 : vector<8x32xf32>
    %cst_47 = arith.constant 1.000000e+00 : f32
    %141 = vector.broadcast %cst_47 : f32 to vector<8x32xf32>
    %142 = arith.addf %141, %140 : vector<8x32xf32>
    %143 = arith.divf %141, %142 : vector<8x32xf32>
    %144 = vector.extract_strided_slice %137 {offsets = [0, 32], sizes = [8, 32], strides = [1, 1]} : vector<8x128xf32> to vector<8x32xf32>
    %145 = arith.negf %144 : vector<8x32xf32>
    %146 = math.exp %145 : vector<8x32xf32>
    %cst_48 = arith.constant 1.000000e+00 : f32
    %147 = vector.broadcast %cst_48 : f32 to vector<8x32xf32>
    %148 = arith.addf %147, %146 : vector<8x32xf32>
    %149 = arith.divf %147, %148 : vector<8x32xf32>
    %150 = vector.extract_strided_slice %137 {offsets = [0, 64], sizes = [8, 32], strides = [1, 1]} : vector<8x128xf32> to vector<8x32xf32>
    %151 = vector.extract_strided_slice %137 {offsets = [0, 96], sizes = [8, 32], strides = [1, 1]} : vector<8x128xf32> to vector<8x32xf32>
    %152 = arith.mulf %143, %151 : vector<8x32xf32>
    %153 = arith.addf %150, %152 : vector<8x32xf32>
    %154 = math.tanh %153 : vector<8x32xf32>
    %cst_49 = arith.constant 1.000000e+00 : f32
    %155 = vector.broadcast %cst_49 : f32 to vector<8x32xf32>
    %156 = arith.subf %155, %149 : vector<8x32xf32>
    %157 = arith.mulf %156, %154 : vector<8x32xf32>
    %158 = arith.mulf %149, %128 : vector<8x32xf32>
    %159 = arith.addf %157, %158 : vector<8x32xf32>
    %c0_50 = arith.constant 0 : index
    %c0_51 = arith.constant 0 : index
    %160 = vector.load %arg5[%c0_50, %c0_51] : memref<8x32xf32, #tpu.memory_space<vmem>>, vector<8x32xf32>
    tpu.vector_store %arg5[%c0_50, %c0_51], %159 {strides = array<i32>} : memref<8x32xf32, #tpu.memory_space<vmem>>, vector<8x32xf32>,
    %c416 = arith.constant 416 : index
    %c0_52 = arith.constant 0 : index
    %161 = vector.load %arg2[%c416, %c0_52] : memref<512x128xbf16, #tpu.memory_space<vmem>>, vector<32x32xbf16>
    %162 = arith.truncf %159 : vector<8x32xf32> to vector<8x32xbf16>
    %cst_53 = arith.constant dense<0.000000e+00> : vector<8x32xf32>
    %163 = tpu.matmul %162, %161, %cst_53 {dimension_numbers = #tpu.dot_dimension_numbers<[1], [0], [0], [1], [0, 0, 1, 1], [], []>} : vector<8x32xbf16>, vector<32x32xbf16>, vector<8x32xf32> -> vector<8x32xf32>
    %c7 = arith.constant 7 : index
    %c0_54 = arith.constant 0 : index
    %164 = vector.load %arg3[%c7, %c0_54] : memref<16x128xf32, #tpu.memory_space<vmem>>, vector<1x32xf32>
    %165 = vector.broadcast %164 : vector<1x32xf32> to vector<8x32xf32>
    %166 = arith.addf %163, %165 : vector<8x32xf32>
    %cst_55 = arith.constant 0.000000e+00 : f32
    %167 = vector.broadcast %cst_55 : f32 to vector<8x32xf32>
    %168 = arith.maximumf %166, %167 : vector<8x32xf32>
    %c448 = arith.constant 448 : index
    %c0_56 = arith.constant 0 : index
    %169 = vector.load %arg2[%c448, %c0_56] : memref<512x128xbf16, #tpu.memory_space<vmem>>, vector<32x32xbf16>
    %170 = arith.truncf %168 : vector<8x32xf32> to vector<8x32xbf16>
    %cst_57 = arith.constant dense<0.000000e+00> : vector<8x32xf32>
    %171 = tpu.matmul %170, %169, %cst_57 {dimension_numbers = #tpu.dot_dimension_numbers<[1], [0], [0], [1], [0, 0, 1, 1], [], []>} : vector<8x32xbf16>, vector<32x32xbf16>, vector<8x32xf32> -> vector<8x32xf32>
    %c8 = arith.constant 8 : index
    %c0_58 = arith.constant 0 : index
    %172 = vector.load %arg3[%c8, %c0_58] : memref<16x128xf32, #tpu.memory_space<vmem>>, vector<1x32xf32>
    %173 = vector.broadcast %172 : vector<1x32xf32> to vector<8x32xf32>
    %174 = arith.addf %171, %173 : vector<8x32xf32>
    %cst_59 = arith.constant 0.000000e+00 : f32
    %175 = vector.broadcast %cst_59 : f32 to vector<8x32xf32>
    %176 = arith.maximumf %174, %175 : vector<8x32xf32>
    %c480 = arith.constant 480 : index
    %c0_60 = arith.constant 0 : index
    %177 = vector.load %arg2[%c480, %c0_60] : memref<512x128xbf16, #tpu.memory_space<vmem>>, vector<32x16xbf16>
    %178 = arith.truncf %176 : vector<8x32xf32> to vector<8x32xbf16>
    %cst_61 = arith.constant dense<0.000000e+00> : vector<8x16xf32>
    %179 = tpu.matmul %178, %177, %cst_61 {dimension_numbers = #tpu.dot_dimension_numbers<[1], [0], [0], [1], [0, 0, 1, 1], [], []>} : vector<8x32xbf16>, vector<32x16xbf16>, vector<8x16xf32> -> vector<8x16xf32>
    %c9 = arith.constant 9 : index
    %c0_62 = arith.constant 0 : index
    %180 = vector.load %arg3[%c9, %c0_62] : memref<16x128xf32, #tpu.memory_space<vmem>>, vector<1x16xf32>
    %181 = vector.broadcast %180 : vector<1x16xf32> to vector<8x16xf32>
    %182 = arith.addf %179, %181 : vector<8x16xf32>
    %183 = arith.negf %182 : vector<8x16xf32>
    %184 = math.exp %183 : vector<8x16xf32>
    %cst_63 = arith.constant 1.000000e+00 : f32
    %185 = vector.broadcast %cst_63 : f32 to vector<8x16xf32>
    %186 = arith.addf %185, %184 : vector<8x16xf32>
    %187 = arith.divf %185, %186 : vector<8x16xf32>
    %c0_64 = arith.constant 0 : index
    %c0_65 = arith.constant 0 : index
    %188 = vector.load %arg4[%c0_64, %c0_65] : memref<8x16xf32, #tpu.memory_space<vmem>>, vector<8x16xf32>
    tpu.vector_store %arg4[%c0_64, %c0_65], %187 {strides = array<i32>} : memref<8x16xf32, #tpu.memory_space<vmem>>, vector<8x16xf32>,
    return
  }
}

</mosaic_0001>

<llo_original>
// kernel: tpu_custom_call.1
$region0: #{tpu_custom_call.1}
  #allocation0 [shape = 'u32[]', space=smem, size = 0x4, offset = 0x4, fixed_abs, tag = 'smem constant byte address 0x4 - core index']
  #allocation1 [shape = 'u32[144,128]{1,0:T(1,128)}', space=vmem, size = 0x12000, scoped, tag = 'internal scratch']
  %s0 = inlined_call_operand.hbm [shape: f32[8,32], index: 0, kind: input, shape index: {}]
  %s1 = inlined_call_operand.hbm [shape: f32[9,64], index: 1, kind: input, shape index: {}]
  %s2 = inlined_call_operand.hbm [shape: bf16[512,128], index: 2, kind: input, shape index: {}]
  %s3 = inlined_call_operand.hbm [shape: f32[16,128], index: 3, kind: input, shape index: {}]
  %s4 = inlined_call_operand.hbm [shape: f32[8,16], index: 4, kind: output, shape index: {0}]
  %s5 = inlined_call_operand.hbm [shape: f32[8,32], index: 5, kind: output, shape index: {1}]
  %6 = xla_tuple %s4, %s5
  %s7 = sld [smem:[#allocation0]]
  $region50: #{tpu_custom_call.1} parent=0
    _
  %s9 = ssub.s32 1, %s7
  %s10 = scalar_select 0, %s9, %s7
  $region1: #{tpu_custom_call.1} parent=0
    #allocation2 [shape = 'u8[4096]{0}', space=vmem, size = 0x1000, scoped, tag = 'input window, operand 0, single buffered']
    #allocation3 [shape = 's32[1]{0}', space=sflag, size = 0x4, scoped, tag = 'scoped memory for tpu_custom_call.1']
    #allocation4 [shape = 's32[1]{0}', space=sflag, size = 0x4, scoped, tag = 'scoped memory for tpu_custom_call.1']
    #allocation5 [shape = 'u8[8192]{0}', space=vmem, size = 0x2000, scoped, tag = 'input window, operand 1, single buffered']
    #allocation6 [shape = 's32[1]{0}', space=sflag, size = 0x4, scoped, tag = 'scoped memory for tpu_custom_call.1']
    #allocation7 [shape = 'u8[131072]{0}', space=vmem, size = 0x20000, scoped, tag = 'input window, operand 2, single buffered']
    #allocation8 [shape = 'u8[8192]{0}', space=vmem, size = 0x2000, scoped, tag = 'input window, operand 3, single buffered']
    #allocation9 [shape = 's32[1]{0}', space=sflag, size = 0x4, scoped, tag = 'scoped memory for tpu_custom_call.1']
    #allocation10 [shape = 'u8[4096]{0}', space=vmem, size = 0x1000, scoped, tag = 'output window, operand 0, single buffered']
    #allocation11 [shape = 'u8[4096]{0}', space=vmem, size = 0x1000, scoped, tag = 'output window, operand 1, single buffered']
    #allocation12 [shape = 's32[1]{0}', space=sflag, size = 0x4, scoped, tag = 'scoped memory for tpu_custom_call.1']
    %11 = vsyncpa [#allocation3], 0
    %12 = vsyncpa [#allocation6], 0
    %13 = vsyncpa [#allocation9], 0
    %14 = vsyncpa [#allocation4], 0
    %15 = vsyncpa [#allocation12], 0
    // Predicated region
    $region2: #{tpu_custom_call.1} parent=1 // pred_check
      _
    $region3: #{tpu_custom_call.1} parent=1 // pred_check_branch
      %17 = sbr.rel (0) target = $region5
    $region4: #{tpu_custom_call.1} parent=1 // pred_region
      %s19 = ssub.s32 128, 128
      %20 = vsyncadd [#allocation3], %s19
      %s22 = sshll.u32 [#allocation2], 4
      %s23 = int_to_ptr.vmem [resolvable:$true] %s22
      %25 = dma.hbm_to_vmem [thread:$0]  %s0, 128, %s23, [#allocation3]
    $region5: #{tpu_custom_call.1} parent=1 // pred_fallthru
      _
    // Predicated region
    $region6: #{tpu_custom_call.1} parent=1 // pred_check
      _
    $region7: #{tpu_custom_call.1} parent=1 // pred_check_branch
      %27 = sbr.rel (0) target = $region9
    $region8: #{tpu_custom_call.1} parent=1 // pred_region
      %s29 = ssub.s32 256, 256
      %30 = vsyncadd [#allocation6], %s29
      %s31 = sshll.u32 [#allocation5], 4
      %s32 = int_to_ptr.vmem [resolvable:$true] %s31
      %37 = dma.hbm_to_vmem [thread:$0]  %s1, 256, %s32, [#allocation6], 128, 128, 8
    $region9: #{tpu_custom_call.1} parent=1 // pred_fallthru
      _
    // Predicated region
    $region10: #{tpu_custom_call.1} parent=1 // pred_check
      _
    $region11: #{tpu_custom_call.1} parent=1 // pred_check_branch
      %39 = sbr.rel (0) target = $region13
    $region12: #{tpu_custom_call.1} parent=1 // pred_region
      %s41 = ssub.s32 4096, 4096
      %42 = vsyncadd [#allocation6], %s41
      %s43 = sshll.u32 [#allocation7], 4
      %s44 = int_to_ptr.vmem [resolvable:$true] %s43
      %49 = dma.hbm_to_vmem [thread:$0]  %s2, 4096, %s44, [#allocation6], 64, 64, 4
    $region13: #{tpu_custom_call.1} parent=1 // pred_fallthru
      _
    // Predicated region
    $region14: #{tpu_custom_call.1} parent=1 // pred_check
      _
    $region15: #{tpu_custom_call.1} parent=1 // pred_check_branch
      %51 = sbr.rel (0) target = $region17
    $region16: #{tpu_custom_call.1} parent=1 // pred_region
      %s53 = ssub.s32 256, 256
      %54 = vsyncadd [#allocation9], %s53
      %s55 = sshll.u32 [#allocation8], 4
      %s56 = int_to_ptr.vmem [resolvable:$true] %s55
      %61 = dma.hbm_to_vmem [thread:$0]  %s3, 256, %s56, [#allocation9], 128, 128, 8
    $region17: #{tpu_custom_call.1} parent=1 // pred_fallthru
      _
    // Predicated region
    $region18: #{tpu_custom_call.1} parent=1 // pred_check
      _
    $region19: #{tpu_custom_call.1} parent=1 // pred_check_branch
      %63 = sbr.rel (0) target = $region21
    $region20: #{tpu_custom_call.1} parent=1 // pred_region
      %64 = dma.done [#allocation3], 128
    $region21: #{tpu_custom_call.1} parent=1 // pred_fallthru
      _
    // Predicated region
    $region22: #{tpu_custom_call.1} parent=1 // pred_check
      _
    $region23: #{tpu_custom_call.1} parent=1 // pred_check_branch
      %66 = sbr.rel (0) target = $region25
    $region24: #{tpu_custom_call.1} parent=1 // pred_region
      %67 = dma.done [#allocation6], 256
    $region25: #{tpu_custom_call.1} parent=1 // pred_fallthru
      _
    // Predicated region
    $region26: #{tpu_custom_call.1} parent=1 // pred_check
      _
    $region27: #{tpu_custom_call.1} parent=1 // pred_check_branch
      %69 = sbr.rel (0) target = $region29
    $region28: #{tpu_custom_call.1} parent=1 // pred_region
      %70 = dma.done [#allocation6], 4096
    $region29: #{tpu_custom_call.1} parent=1 // pred_fallthru
      _
    // Predicated region
    $region30: #{tpu_custom_call.1} parent=1 // pred_check
      _
    $region31: #{tpu_custom_call.1} parent=1 // pred_check_branch
      %72 = sbr.rel (0) target = $region33
    $region32: #{tpu_custom_call.1} parent=1 // pred_region
      %73 = dma.done [#allocation9], 256
    $region33: #{tpu_custom_call.1} parent=1 // pred_fallthru
      _
    %v75 = vld [vmem:[#allocation2] sm:$0xff]
    %v76 = vpack.c.bf16 %v75, %v75
    %v77 = vld [vmem:[#allocation5] sm:$0xff]
    %v78 = vld [vmem:[#allocation5 + $0x8] sm:$0x1]
    %v79 = vld [vmem:[#allocation7] sm:$0xf]
    %v80 = vld [vmem:[#allocation7 + $0x4] sm:$0xf]
    %v81 = vld [vmem:[#allocation7 + $0x8] sm:$0xf]
    %v82 = vld [vmem:[#allocation7 + $0xc] sm:$0xf]
    %v83 = vld [vmem:[#allocation7 + $0x10] sm:$0xf]
    %v84 = vld [vmem:[#allocation7 + $0x14] sm:$0xf]
    %v85 = vld [vmem:[#allocation7 + $0x18] sm:$0xf]
    %v86 = vld [vmem:[#allocation7 + $0x1c] sm:$0xf]
    %v87 = vld [vmem:[#allocation8] sm:$0x1]
    %v88 = vld [vmem:[#allocation7 + $0x20] sm:$0xf]
    %v89 = vld [vmem:[#allocation7 + $0x24] sm:$0xf]
    %v90 = vld [vmem:[#allocation7 + $0x28] sm:$0xf]
    %v91 = vld [vmem:[#allocation7 + $0x2c] sm:$0xf]
    %v92 = vld [vmem:[#allocation8 + $0x1] sm:$0x1]
    %v93 = vpack.c.bf16 %v78, %v77
    %v94 = vlaneseq
    %v95 = vshrl.u32 %v94, 7
    %v96 = vsub.s32 0, %v95
    %v97 = vrot.slane %v87, %v96
    %v106 = vunpack.c.l.b16 %v79
    %v107 = vunpack.c.l.b16 %v80
    %v108 = vunpack.c.l.b16 %v81
    %v109 = vunpack.c.l.b16 %v82
    %v110 = vunpack.c.l.b16 %v83
    %v111 = vunpack.c.l.b16 %v84
    %v112 = vunpack.c.l.b16 %v85
    %v113 = vunpack.c.l.b16 %v86
    %v114 = vpack.c.b16 %v107, %v106
    %v115 = vpack.c.b16 %v109, %v108
    %v116 = vpack.c.b16 %v111, %v110
    %v117 = vpack.c.b16 %v113, %v112
    %vm122 = vcmask 523264
    %v124 = vsel %vm122, %v93, 0
    %126 = vmatprep.subr.bf16.mxu0 0
    %127 = vmatpush1.bf16.msra.mxu0 0
    %128 = vmatprep.subr.bf16.mxu0 0
    %129 = vmatpush1.bf16.msra.mxu0 0
    %130 = vmatprep.subr.bf16.mxu0 0
    %131 = vmatpush1.bf16.msra.mxu0 0
    %132 = vmatprep.subr.bf16.mxu0 0
    %133 = vmatpush1.bf16.msra.mxu0 0
    %134 = vmatprep.subr.bf16.mxu0 0
    %135 = vmatpush1.bf16.msra.mxu0 %v117
    %136 = vmatprep.subr.bf16.mxu0 0
    %137 = vmatpush1.bf16.msra.mxu0 %v116
    %138 = vmatprep.subr.bf16.mxu0 0
    %139 = vmatpush1.bf16.msra.mxu0 %v115
    %140 = vmatprep.subr.bf16.mxu0 0
    %141 = vmatpush1.bf16.msra.mxu0 %v114
    %142 = vmatprep.subr.bf16.mxu0 0
    %143 = vmatpush2.bf16.msra.mxu0 0
    %144 = vmatprep.subr.bf16.mxu0 0
    %145 = vmatpush2.bf16.msra.mxu0 0
    %146 = vmatprep.subr.bf16.mxu0 0
    %147 = vmatpush2.bf16.msra.mxu0 0
    %148 = vmatprep.subr.bf16.mxu0 0
    %149 = vmatpush2.bf16.msra.mxu0 0
    %150 = vmatprep.subr.bf16.mxu0 0
    %151 = vmatpush2.bf16.msra.mxu0 0
    %152 = vmatprep.subr.bf16.mxu0 0
    %153 = vmatpush2.bf16.msra.mxu0 0
    %154 = vmatprep.subr.bf16.mxu0 0
    %155 = vmatpush2.bf16.msra.mxu0 0
    %156 = vmatprep.subr.bf16.mxu0 0
    %157 = vmatpush2.bf16.msra.mxu0 0
    %158 = vmatprep.mubr.bf16.mxu0 0
    %159 = vmatmul.mubr.bf16.gmra.mxu0 %v124
    %v160 = vpop.f32.mrf.mxu0
    %v161 = vadd.f32 %v97, %v160
    %v162 = vpop.f32.mrf.mxu0
    %v163 = vpop.f32.mrf.mxu0
    %v164 = vadd.f32 %v97, %v163
    %v165 = vpop.f32.mrf.mxu0
    %166 = vdwg.mxu0
    %v167 = vmax.f32 %v161, 0.0
    %v168 = vmax.f32 %v164, 0.0
    %v169 = vpack.c.bf16 %v168, %v167
    %v170 = vlaneseq
    %v171 = vshrl.u32 %v170, 7
    %v172 = vsub.s32 0, %v171
    %v173 = vrot.slane %v92, %v172
    %v178 = vunpack.c.l.b16 %v88
    %v179 = vunpack.c.l.b16 %v89
    %v180 = vunpack.c.l.b16 %v90
    %v181 = vunpack.c.l.b16 %v91
    %v182 = vpack.c.b16 %v179, %v178
    %v183 = vpack.c.b16 %v181, %v180
    %vm186 = vcmask 261120
    %v188 = vsel %vm186, %v169, 0
    %190 = vmatprep.subr.bf16.mxu0 0
    %191 = vmatpush1.bf16.msra.mxu0 0
    %192 = vmatprep.subr.bf16.mxu0 0
    %193 = vmatpush1.bf16.msra.mxu0 0
    %194 = vmatprep.subr.bf16.mxu0 0
    %195 = vmatpush1.bf16.msra.mxu0 0
    %196 = vmatprep.subr.bf16.mxu0 0
    %197 = vmatpush1.bf16.msra.mxu0 0
    %198 = vmatprep.subr.bf16.mxu0 0
    %199 = vmatpush1.bf16.msra.mxu0 0
    %200 = vmatprep.subr.bf16.mxu0 0
    %201 = vmatpush1.bf16.msra.mxu0 0
    %202 = vmatprep.subr.bf16.mxu0 0
    %203 = vmatpush1.bf16.msra.mxu0 %v183
    %204 = vmatprep.subr.bf16.mxu0 0
    %205 = vmatpush1.bf16.msra.mxu0 %v182
    %206 = vmatprep.subr.bf16.mxu0 0
    %207 = vmatpush2.bf16.msra.mxu0 0
    %208 = vmatprep.subr.bf16.mxu0 0
    %209 = vmatpush2.bf16.msra.mxu0 0
    %210 = vmatprep.subr.bf16.mxu0 0
    %211 = vmatpush2.bf16.msra.mxu0 0
    %212 = vmatprep.subr.bf16.mxu0 0
    %213 = vmatpush2.bf16.msra.mxu0 0
    %214 = vmatprep.subr.bf16.mxu0 0
    %215 = vmatpush2.bf16.msra.mxu0 0
    %216 = vmatprep.subr.bf16.mxu0 0
    %217 = vmatpush2.bf16.msra.mxu0 0
    %218 = vmatprep.subr.bf16.mxu0 0
    %219 = vmatpush2.bf16.msra.mxu0 0
    %220 = vmatprep.subr.bf16.mxu0 0
    %221 = vmatpush2.bf16.msra.mxu0 0
    %222 = vmatprep.mubr.bf16.mxu0 0
    %223 = vmatmul.mubr.bf16.gmra.mxu0 %v188
    %v224 = vpop.f32.mrf.mxu0
    %v225 = vadd.f32 %v173, %v224
    %v226 = vpop.f32.mrf.mxu0
    %v227 = vpop.f32.mrf.mxu0
    %v228 = vadd.f32 %v173, %v227
    %v229 = vpop.f32.mrf.mxu0
    %230 = vdwg.mxu0
    %v231 = vmul.f32 %v225, %v225
    %v232 = vmul.f32 %v228, %v228
    %v233 = vsel %vm186, %v231, 0.0
    %234 = vadd.xlane.f32.xlu0 %v233
    %v235 = vpop.xlane.xlu0 %234
    %vm236 = vcmask 253952
    %v237 = vsel %vm236, %v232, 0.0
    %238 = vadd.xlane.f32.xlu0 %v237
    %v239 = vpop.xlane.xlu0 %238
    %v240 = vmax.f32 %v235, 1e-24
    %v241 = vmax.f32 %v239, 1e-24
    %v242 = vrsqrt.pop %v240
    %v243 = vrsqrt.pop %v241
    %v244 = vmul.f32 %v225, %v242
    %v245 = vmul.f32 %v228, %v243
    %v246 = vlaneseq
    %v247 = vshrl.u32 %v246, 7
    %v248 = vlaneseq
    %v249 = vand.u32 %v248, 127
    %vm250 = vcmp.ne.s32.totalorder %v247, %v249
    %v251 = vsel %vm250, 1, 0
    %v252 = vcvt.s32.f32 %v251
    %v253 = vlaneseq
    %v254 = vshrl.u32 %v253, 7
    %v255 = vsub.s32 0, %v254
    %v256 = vrot.slane %v252, %v255
    %258 = vbcast.lane.b32.xlu0 %v256, 256
    %v259 = vpop.permute.xlu0 %258
    %v260 = vlaneseq
    %v261 = vshrl.u32 %v260, 7
    %v262 = vsub.s32 1, %v261
    %v263 = vrot.slane %v252, %v262
    %265 = vbcast.lane.b32.xlu0 %v263, 256
    %v266 = vpop.permute.xlu0 %265
    %v267 = vlaneseq
    %v268 = vshrl.u32 %v267, 7
    %v269 = vsub.s32 2, %v268
    %v270 = vrot.slane %v252, %v269
    %272 = vbcast.lane.b32.xlu0 %v270, 256
    %v273 = vpop.permute.xlu0 %272
    %v274 = vlaneseq
    %v275 = vshrl.u32 %v274, 7
    %v276 = vsub.s32 3, %v275
    %v277 = vrot.slane %v252, %v276
    %279 = vbcast.lane.b32.xlu0 %v277, 256
    %v280 = vpop.permute.xlu0 %279
    %v281 = vlaneseq
    %v282 = vshrl.u32 %v281, 7
    %v283 = vsub.s32 4, %v282
    %v284 = vrot.slane %v252, %v283
    %286 = vbcast.lane.b32.xlu0 %v284, 256
    %v287 = vpop.permute.xlu0 %286
    %v288 = vlaneseq
    %v289 = vshrl.u32 %v288, 7
    %v290 = vsub.s32 5, %v289
    %v291 = vrot.slane %v252, %v290
    %293 = vbcast.lane.b32.xlu0 %v291, 256
    %v294 = vpop.permute.xlu0 %293
    %v295 = vlaneseq
    %v296 = vshrl.u32 %v295, 7
    %v297 = vsub.s32 6, %v296
    %v298 = vrot.slane %v252, %v297
    %300 = vbcast.lane.b32.xlu0 %v298, 256
    %v301 = vpop.permute.xlu0 %300
    %v302 = vlaneseq
    %v303 = vshrl.u32 %v302, 7
    %v304 = vsub.s32 7, %v303
    %v305 = vrot.slane %v252, %v304
    %307 = vbcast.lane.b32.xlu0 %v305, 256
    %v308 = vpop.permute.xlu0 %307
    %v309 = vld [vmem:[#allocation7 + $0x30] sm:$0xf]
    %v310 = vld [vmem:[#allocation7 + $0x34] sm:$0xf]
    %v311 = vld [vmem:[#allocation7 + $0x38] sm:$0xf]
    %v312 = vld [vmem:[#allocation7 + $0x3c] sm:$0xf]
    %v317 = vunpack.c.l.b16 %v309
    %v318 = vunpack.c.l.b16 %v310
    %v319 = vunpack.c.l.b16 %v311
    %v320 = vunpack.c.l.b16 %v312
    %v321 = vpack.c.b16 %v318, %v317
    %v322 = vpack.c.b16 %v320, %v319
    %v326 = vsel %vm186, %v76, 0
    %328 = vmatprep.subr.bf16.mxu0 0
    %329 = vmatpush1.bf16.msra.mxu0 0
    %330 = vmatprep.subr.bf16.mxu0 0
    %331 = vmatpush1.bf16.msra.mxu0 0
    %332 = vmatprep.subr.bf16.mxu0 0
    %333 = vmatpush1.bf16.msra.mxu0 0
    %334 = vmatprep.subr.bf16.mxu0 0
    %335 = vmatpush1.bf16.msra.mxu0 0
    %336 = vmatprep.subr.bf16.mxu0 0
    %337 = vmatpush1.bf16.msra.mxu0 0
    %338 = vmatprep.subr.bf16.mxu0 0
    %339 = vmatpush1.bf16.msra.mxu0 0
    %340 = vmatprep.subr.bf16.mxu0 0
    %341 = vmatpush1.bf16.msra.mxu0 %v322
    %342 = vmatprep.subr.bf16.mxu0 0
    %343 = vmatpush1.bf16.msra.mxu0 %v321
    %344 = vmatprep.subr.bf16.mxu0 0
    %345 = vmatpush2.bf16.msra.mxu0 0
    %346 = vmatprep.subr.bf16.mxu0 0
    %347 = vmatpush2.bf16.msra.mxu0 0
    %348 = vmatprep.subr.bf16.mxu0 0
    %349 = vmatpush2.bf16.msra.mxu0 0
    %350 = vmatprep.subr.bf16.mxu0 0
    %351 = vmatpush2.bf16.msra.mxu0 0
    %352 = vmatprep.subr.bf16.mxu0 0
    %353 = vmatpush2.bf16.msra.mxu0 0
    %354 = vmatprep.subr.bf16.mxu0 0
    %355 = vmatpush2.bf16.msra.mxu0 0
    %356 = vmatprep.subr.bf16.mxu0 0
    %357 = vmatpush2.bf16.msra.mxu0 0
    %358 = vmatprep.subr.bf16.mxu0 0
    %359 = vmatpush2.bf16.msra.mxu0 0
    %360 = vmatprep.mubr.bf16.mxu0 0
    %361 = vmatmul.mubr.bf16.gmra.mxu0 %v326
    %v362 = vpop.f32.mrf.mxu0
    %v363 = vadd.f32 0.0, %v362
    %v364 = vpop.f32.mrf.mxu0
    %v365 = vpop.f32.mrf.mxu0
    %v366 = vpop.f32.mrf.mxu0
    %367 = vdwg.mxu0
    %v368 = vld [vmem:[#allocation7 + $0x40] sm:$0xf]
    %v369 = vld [vmem:[#allocation7 + $0x44] sm:$0xf]
    %v370 = vld [vmem:[#allocation7 + $0x48] sm:$0xf]
    %v371 = vld [vmem:[#allocation7 + $0x4c] sm:$0xf]
    %v376 = vunpack.c.l.b16 %v368
    %v377 = vunpack.c.l.b16 %v369
    %v378 = vunpack.c.l.b16 %v370
    %v379 = vunpack.c.l.b16 %v371
    %v380 = vpack.c.b16 %v377, %v376
    %v381 = vpack.c.b16 %v379, %v378
    %384 = vmatprep.subr.bf16.mxu0 0
    %385 = vmatpush1.bf16.msra.mxu0 0
    %386 = vmatprep.subr.bf16.mxu0 0
    %387 = vmatpush1.bf16.msra.mxu0 0
    %388 = vmatprep.subr.bf16.mxu0 0
    %389 = vmatpush1.bf16.msra.mxu0 0
    %390 = vmatprep.subr.bf16.mxu0 0
    %391 = vmatpush1.bf16.msra.mxu0 0
    %392 = vmatprep.subr.bf16.mxu0 0
    %393 = vmatpush1.bf16.msra.mxu0 0
    %394 = vmatprep.subr.bf16.mxu0 0
    %395 = vmatpush1.bf16.msra.mxu0 0
    %396 = vmatprep.subr.bf16.mxu0 0
    %397 = vmatpush1.bf16.msra.mxu0 %v381
    %398 = vmatprep.subr.bf16.mxu0 0
    %399 = vmatpush1.bf16.msra.mxu0 %v380
    %400 = vmatprep.subr.bf16.mxu0 0
    %401 = vmatpush2.bf16.msra.mxu0 0
    %402 = vmatprep.subr.bf16.mxu0 0
    %403 = vmatpush2.bf16.msra.mxu0 0
    %404 = vmatprep.subr.bf16.mxu0 0
    %405 = vmatpush2.bf16.msra.mxu0 0
    %406 = vmatprep.subr.bf16.mxu0 0
    %407 = vmatpush2.bf16.msra.mxu0 0
    %408 = vmatprep.subr.bf16.mxu0 0
    %409 = vmatpush2.bf16.msra.mxu0 0
    %410 = vmatprep.subr.bf16.mxu0 0
    %411 = vmatpush2.bf16.msra.mxu0 0
    %412 = vmatprep.subr.bf16.mxu0 0
    %413 = vmatpush2.bf16.msra.mxu0 0
    %414 = vmatprep.subr.bf16.mxu0 0
    %415 = vmatpush2.bf16.msra.mxu0 0
    %416 = vmatprep.mubr.bf16.mxu0 0
    %417 = vmatmul.mubr.bf16.gmra.mxu0 %v326
    %v418 = vpop.f32.mrf.mxu0
    %v419 = vadd.f32 0.0, %v418
    %v420 = vpop.f32.mrf.mxu0
    %v421 = vpop.f32.mrf.mxu0
    %v422 = vpop.f32.mrf.mxu0
    %423 = vdwg.mxu0
    %v425 = vcombine.high %v363, %v363
    %v427 = vunpack.c.l.s4 1966171168
    %v428 = vunpack.c.0.s8 %v427
    %v429 = vlaneseq
    %v430 = vshrl.u32 %v429, 7
    %v431 = vsub.s32 %v428, %v430
    %v432 = vrot.slane %v363, %v431
    %v434 = vunpack.c.l.s4 1966171168
    %v435 = vunpack.c.0.s8 %v434
    %v436 = vlaneseq
    %v437 = vshrl.u32 %v436, 7
    %v438 = vsub.s32 %v435, %v437
    %v439 = vrot.slane %v425, %v438
    %v440 = vcombine.high %v432, %v432
    %v441 = vcombine.high %v439, %v439
    %v443 = vunpack.c.l.s4 1966171168
    %v444 = vunpack.c.0.s8 %v443
    %v445 = vlaneseq
    %v446 = vshrl.u32 %v445, 7
    %v447 = vsub.s32 %v444, %v446
    %v448 = vrot.slane %v432, %v447
    %v450 = vunpack.c.l.s4 1966171168
    %v451 = vunpack.c.0.s8 %v450
    %v452 = vlaneseq
    %v453 = vshrl.u32 %v452, 7
    %v454 = vsub.s32 %v451, %v453
    %v455 = vrot.slane %v439, %v454
    %v457 = vunpack.c.l.s4 1966171168
    %v458 = vunpack.c.0.s8 %v457
    %v459 = vlaneseq
    %v460 = vshrl.u32 %v459, 7
    %v461 = vsub.s32 %v458, %v460
    %v462 = vrot.slane %v440, %v461
    %v464 = vunpack.c.l.s4 1966171168
    %v465 = vunpack.c.0.s8 %v464
    %v466 = vlaneseq
    %v467 = vshrl.u32 %v466, 7
    %v468 = vsub.s32 %v465, %v467
    %v469 = vrot.slane %v441, %v468
    %v470 = vcombine.high %v448, %v448
    %v471 = vcombine.high %v455, %v455
    %v472 = vcombine.high %v462, %v462
    %v473 = vcombine.high %v469, %v469
    %v474 = vlaneseq
    %v475 = vshrl.u32 %v474, 7
    %v476 = vsub.s32 0, %v475
    %v477 = vrot.slane %v448, %v476
    %v478 = vlaneseq
    %v479 = vshrl.u32 %v478, 7
    %v480 = vsub.s32 0, %v479
    %v481 = vrot.slane %v462, %v480
    %v482 = vlaneseq
    %v483 = vshrl.u32 %v482, 7
    %v484 = vsub.s32 0, %v483
    %v485 = vrot.slane %v470, %v484
    %v486 = vlaneseq
    %v487 = vshrl.u32 %v486, 7
    %v488 = vsub.s32 0, %v487
    %v489 = vrot.slane %v472, %v488
    %v490 = vlaneseq
    %v491 = vshrl.u32 %v490, 7
    %v492 = vsub.s32 0, %v491
    %v493 = vrot.slane %v455, %v492
    %v494 = vlaneseq
    %v495 = vshrl.u32 %v494, 7
    %v496 = vsub.s32 0, %v495
    %v497 = vrot.slane %v469, %v496
    %v498 = vlaneseq
    %v499 = vshrl.u32 %v498, 7
    %v500 = vsub.s32 0, %v499
    %v501 = vrot.slane %v471, %v500
    %v502 = vlaneseq
    %v503 = vshrl.u32 %v502, 7
    %v504 = vsub.s32 0, %v503
    %v505 = vrot.slane %v473, %v504
    %v514 = vadd.f32 %v477, %v419
    %v515 = vadd.f32 %v481, %v419
    %v516 = vadd.f32 %v485, %v419
    %v517 = vadd.f32 %v489, %v419
    %v518 = vadd.f32 %v493, %v419
    %v519 = vadd.f32 %v497, %v419
    %v520 = vadd.f32 %v501, %v419
    %v521 = vadd.f32 %v505, %v419
    %v522 = vld [vmem:[#allocation8 + $0x2] sm:$0x1]
    %v523 = vlaneseq
    %v524 = vshrl.u32 %v523, 7
    %v525 = vsub.s32 0, %v524
    %v526 = vrot.slane %v522, %v525
    %v527 = vadd.f32 %v514, %v526
    %v528 = vadd.f32 %v515, %v526
    %v529 = vadd.f32 %v516, %v526
    %v530 = vadd.f32 %v517, %v526
    %v531 = vadd.f32 %v518, %v526
    %v532 = vadd.f32 %v519, %v526
    %v533 = vadd.f32 %v520, %v526
    %v534 = vadd.f32 %v521, %v526
    %v535 = vmax.f32 %v527, 0.0
    %v536 = vmax.f32 %v528, 0.0
    %v537 = vmax.f32 %v529, 0.0
    %v538 = vmax.f32 %v530, 0.0
    %v539 = vmax.f32 %v531, 0.0
    %v540 = vmax.f32 %v532, 0.0
    %v541 = vmax.f32 %v533, 0.0
    %v542 = vmax.f32 %v534, 0.0
    %v543 = vld [vmem:[#allocation7 + $0x50] sm:$0xf]
    %v544 = vld [vmem:[#allocation7 + $0x54] sm:$0xf]
    %v545 = vld [vmem:[#allocation7 + $0x58] sm:$0xf]
    %v546 = vld [vmem:[#allocation7 + $0x5c] sm:$0xf]
    %v547 = vld [vmem:[#allocation7 + $0x60] sm:$0xf]
    %v548 = vld [vmem:[#allocation7 + $0x64] sm:$0xf]
    %v549 = vld [vmem:[#allocation7 + $0x68] sm:$0xf]
    %v550 = vld [vmem:[#allocation7 + $0x6c] sm:$0xf]
    %v551 = vpack.c.bf16 %v536, %v535
    %v552 = vpack.c.bf16 %v538, %v537
    %v553 = vpack.c.bf16 %v540, %v539
    %v554 = vpack.c.bf16 %v542, %v541
    %v555 = vld [vmem:[#allocation8 + $0x3] sm:$0x1]
    %v556 = vlaneseq
    %v557 = vshrl.u32 %v556, 7
    %v558 = vsub.s32 0, %v557
    %v559 = vrot.slane %v555, %v558
    %v568 = vunpack.c.l.b16 %v543
    %v569 = vunpack.c.l.b16 %v544
    %v570 = vunpack.c.l.b16 %v545
    %v571 = vunpack.c.l.b16 %v546
    %v572 = vunpack.c.l.b16 %v547
    %v573 = vunpack.c.l.b16 %v548
    %v574 = vunpack.c.l.b16 %v549
    %v575 = vunpack.c.l.b16 %v550
    %v576 = vpack.c.b16 %v569, %v568
    %v577 = vpack.c.b16 %v571, %v570
    %v578 = vpack.c.b16 %v573, %v572
    %v579 = vpack.c.b16 %v575, %v574
    %v585 = vsel %vm122, %v551, 0
    %v588 = vsel %vm122, %v552, 0
    %v591 = vsel %vm122, %v553, 0
    %v594 = vsel %vm122, %v554, 0
    %596 = vmatprep.subr.bf16.mxu0 0
    %597 = vmatpush1.bf16.msra.mxu0 0
    %598 = vmatprep.subr.bf16.mxu0 0
    %599 = vmatpush1.bf16.msra.mxu0 0
    %600 = vmatprep.subr.bf16.mxu0 0
    %601 = vmatpush1.bf16.msra.mxu0 0
    %602 = vmatprep.subr.bf16.mxu0 0
    %603 = vmatpush1.bf16.msra.mxu0 0
    %604 = vmatprep.subr.bf16.mxu0 0
    %605 = vmatpush1.bf16.msra.mxu0 %v579
    %606 = vmatprep.subr.bf16.mxu0 0
    %607 = vmatpush1.bf16.msra.mxu0 %v578
    %608 = vmatprep.subr.bf16.mxu0 0
    %609 = vmatpush1.bf16.msra.mxu0 %v577
    %610 = vmatprep.subr.bf16.mxu0 0
    %611 = vmatpush1.bf16.msra.mxu0 %v576
    %612 = vmatprep.subr.bf16.mxu0 0
    %613 = vmatpush2.bf16.msra.mxu0 0
    %614 = vmatprep.subr.bf16.mxu0 0
    %615 = vmatpush2.bf16.msra.mxu0 0
    %616 = vmatprep.subr.bf16.mxu0 0
    %617 = vmatpush2.bf16.msra.mxu0 0
    %618 = vmatprep.subr.bf16.mxu0 0
    %619 = vmatpush2.bf16.msra.mxu0 0
    %620 = vmatprep.subr.bf16.mxu0 0
    %621 = vmatpush2.bf16.msra.mxu0 0
    %622 = vmatprep.subr.bf16.mxu0 0
    %623 = vmatpush2.bf16.msra.mxu0 0
    %624 = vmatprep.subr.bf16.mxu0 0
    %625 = vmatpush2.bf16.msra.mxu0 0
    %626 = vmatprep.subr.bf16.mxu0 0
    %627 = vmatpush2.bf16.msra.mxu0 0
    %628 = vmatprep.mubr.bf16.mxu0 0
    %629 = vmatmul.mubr.bf16.gmra.mxu0 %v585
    %v630 = vpop.f32.mrf.mxu0
    %v631 = vadd.f32 %v559, %v630
    %v632 = vpop.f32.mrf.mxu0
    %v633 = vpop.f32.mrf.mxu0
    %v634 = vadd.f32 %v559, %v633
    %v635 = vpop.f32.mrf.mxu0
    %636 = vmatprep.mubr.bf16.mxu0 0
    %637 = vmatmul.mubr.bf16.gmra.mxu0 %v588
    %v638 = vpop.f32.mrf.mxu0
    %v639 = vadd.f32 %v559, %v638
    %v640 = vpop.f32.mrf.mxu0
    %v641 = vpop.f32.mrf.mxu0
    %v642 = vadd.f32 %v559, %v641
    %v643 = vpop.f32.mrf.mxu0
    %644 = vmatprep.mubr.bf16.mxu0 0
    %645 = vmatmul.mubr.bf16.gmra.mxu0 %v591
    %v646 = vpop.f32.mrf.mxu0
    %v647 = vadd.f32 %v559, %v646
    %v648 = vpop.f32.mrf.mxu0
    %v649 = vpop.f32.mrf.mxu0
    %v650 = vadd.f32 %v559, %v649
    %v651 = vpop.f32.mrf.mxu0
    %652 = vmatprep.mubr.bf16.mxu0 0
    %653 = vmatmul.mubr.bf16.gmra.mxu0 %v594
    %v654 = vpop.f32.mrf.mxu0
    %v655 = vadd.f32 %v559, %v654
    %v656 = vpop.f32.mrf.mxu0
    %v657 = vpop.f32.mrf.mxu0
    %v658 = vadd.f32 %v559, %v657
    %v659 = vpop.f32.mrf.mxu0
    %660 = vdwg.mxu0
    %v661 = vxor.u32 %v631, 2147483648
    %v662 = vxor.u32 %v634, 2147483648
    %v663 = vxor.u32 %v639, 2147483648
    %v664 = vxor.u32 %v642, 2147483648
    %v665 = vxor.u32 %v647, 2147483648
    %v666 = vxor.u32 %v650, 2147483648
    %v667 = vxor.u32 %v655, 2147483648
    %v668 = vxor.u32 %v658, 2147483648
    %v669 = vmul.f32 %v661, 1.442695
    %v670 = vpow.pop %v669
    %v671 = vmul.f32 %v662, 1.442695
    %v672 = vpow.pop %v671
    %v673 = vmul.f32 %v663, 1.442695
    %v674 = vpow.pop %v673
    %v675 = vmul.f32 %v664, 1.442695
    %v676 = vpow.pop %v675
    %v677 = vmul.f32 %v665, 1.442695
    %v678 = vpow.pop %v677
    %v679 = vmul.f32 %v666, 1.442695
    %v680 = vpow.pop %v679
    %v681 = vmul.f32 %v667, 1.442695
    %v682 = vpow.pop %v681
    %v683 = vmul.f32 %v668, 1.442695
    %v684 = vpow.pop %v683
    %v685 = vadd.f32 %v670, 1.0
    %v686 = vadd.f32 %v672, 1.0
    %v687 = vadd.f32 %v674, 1.0
    %v688 = vadd.f32 %v676, 1.0
    %v689 = vadd.f32 %v678, 1.0
    %v690 = vadd.f32 %v680, 1.0
    %v691 = vadd.f32 %v682, 1.0
    %v692 = vadd.f32 %v684, 1.0
    %v693 = vrcp.pop %v685
    %v694 = vmul.f32 1.0, %v693
    %v695 = vrcp.pop %v686
    %v696 = vmul.f32 1.0, %v695
    %v697 = vrcp.pop %v687
    %v698 = vmul.f32 1.0, %v697
    %v699 = vrcp.pop %v688
    %v700 = vmul.f32 1.0, %v699
    %v701 = vrcp.pop %v689
    %v702 = vmul.f32 1.0, %v701
    %v703 = vrcp.pop %v690
    %v704 = vmul.f32 1.0, %v703
    %v705 = vrcp.pop %v691
    %v706 = vmul.f32 1.0, %v705
    %v707 = vrcp.pop %v692
    %v708 = vmul.f32 1.0, %v707
    %v709 = vpack.c.bf16 %v634, %v631
    %v710 = vpack.c.bf16 %v642, %v639
    %v711 = vpack.c.bf16 %v650, %v647
    %v712 = vpack.c.bf16 %v658, %v655
    %v713 = vpack.c.bf16 %v245, %v244
    %v715 = vshrl.u32 %v713, 16
    %v717 = vshll.u32 %v713, 16
    %v719 = vrot.slane %v717, 1
    %v720 = vor.u32 %v715, %v719
    %v722 = vsel %vm186, %v709, 0
    %v725 = vsel %vm186, %v710, 0
    %v728 = vsel %vm186, %v711, 0
    %v731 = vsel %vm186, %v712, 0
    %v734 = vsel %vm186, %v720, 0
    %736 = vmatprep.subr.bf16.mxu0 0
    %737 = vmatpush1.bf16.xpose.msra.mxu0 0
    %738 = vmatprep.subr.bf16.mxu0 0
    %739 = vmatpush1.bf16.xpose.msra.mxu0 0
    %740 = vmatprep.subr.bf16.mxu0 0
    %741 = vmatpush1.bf16.xpose.msra.mxu0 0
    %742 = vmatprep.subr.bf16.mxu0 0
    %743 = vmatpush1.bf16.xpose.msra.mxu0 0
    %744 = vmatprep.subr.bf16.mxu0 0
    %745 = vmatpush1.bf16.xpose.msra.mxu0 0
    %746 = vmatprep.subr.bf16.mxu0 0
    %747 = vmatpush1.bf16.xpose.msra.mxu0 0
    %748 = vmatprep.subr.bf16.mxu0 0
    %749 = vmatpush1.bf16.xpose.msra.mxu0 0
    %750 = vmatprep.subr.bf16.mxu0 0
    %751 = vmatpush1.bf16.xpose.msra.mxu0 %v734
    %752 = vmatprep.subr.bf16.mxu0 0
    %753 = vmatpush2.bf16.xpose.msra.mxu0 0
    %754 = vmatprep.subr.bf16.mxu0 0
    %755 = vmatpush2.bf16.xpose.msra.mxu0 0
    %756 = vmatprep.subr.bf16.mxu0 0
    %757 = vmatpush2.bf16.xpose.msra.mxu0 0
    %758 = vmatprep.subr.bf16.mxu0 0
    %759 = vmatpush2.bf16.xpose.msra.mxu0 0
    %760 = vmatprep.subr.bf16.mxu0 0
    %761 = vmatpush2.bf16.xpose.msra.mxu0 0
    %762 = vmatprep.subr.bf16.mxu0 0
    %763 = vmatpush2.bf16.xpose.msra.mxu0 0
    %764 = vmatprep.subr.bf16.mxu0 0
    %765 = vmatpush2.bf16.xpose.msra.mxu0 0
    %766 = vmatprep.subr.bf16.mxu0 0
    %767 = vmatpush2.bf16.xpose.msra.mxu0 0
    %768 = vmatprep.mubr.bf16.mxu0 0
    %769 = vmatmul.mubr.bf16.gmra.mxu0 %v722
    %v770 = vpop.f32.mrf.mxu0
    %v771 = vadd.f32 0.0, %v770
    %v772 = vpop.f32.mrf.mxu0
    %v773 = vpop.f32.mrf.mxu0
    %v774 = vadd.f32 0.0, %v773
    %v775 = vpop.f32.mrf.mxu0
    %776 = vmatprep.mubr.bf16.mxu0 0
    %777 = vmatmul.mubr.bf16.gmra.mxu0 %v725
    %v778 = vpop.f32.mrf.mxu0
    %v779 = vadd.f32 0.0, %v778
    %v780 = vpop.f32.mrf.mxu0
    %v781 = vpop.f32.mrf.mxu0
    %v782 = vadd.f32 0.0, %v781
    %v783 = vpop.f32.mrf.mxu0
    %784 = vmatprep.mubr.bf16.mxu0 0
    %785 = vmatmul.mubr.bf16.gmra.mxu0 %v728
    %v786 = vpop.f32.mrf.mxu0
    %v787 = vadd.f32 0.0, %v786
    %v788 = vpop.f32.mrf.mxu0
    %v789 = vpop.f32.mrf.mxu0
    %v790 = vadd.f32 0.0, %v789
    %v791 = vpop.f32.mrf.mxu0
    %792 = vmatprep.mubr.bf16.mxu0 0
    %793 = vmatmul.mubr.bf16.gmra.mxu0 %v731
    %v794 = vpop.f32.mrf.mxu0
    %v795 = vadd.f32 0.0, %v794
    %v796 = vpop.f32.mrf.mxu0
    %v797 = vpop.f32.mrf.mxu0
    %v798 = vadd.f32 0.0, %v797
    %v799 = vpop.f32.mrf.mxu0
    %800 = vdwg.mxu0
    %v801 = vmul.f32 %v771, 0.17677669
    %v802 = vmul.f32 %v774, 0.17677669
    %v803 = vmul.f32 %v779, 0.17677669
    %v804 = vmul.f32 %v782, 0.17677669
    %v805 = vmul.f32 %v787, 0.17677669
    %v806 = vmul.f32 %v790, 0.17677669
    %v807 = vmul.f32 %v795, 0.17677669
    %v808 = vmul.f32 %v798, 0.17677669
    %vm809 = vcmask 64512
    %v810 = vsel %vm809, %v801, -inf
    %811 = vmax.xlane.f32.xlu0 %v810
    %v812 = vpop.xlane.xlu0 %811
    %v813 = vsel %vm809, %v802, -inf
    %814 = vmax.xlane.f32.xlu0 %v813
    %v815 = vpop.xlane.xlu0 %814
    %v816 = vsel %vm809, %v803, -inf
    %817 = vmax.xlane.f32.xlu0 %v816
    %v818 = vpop.xlane.xlu0 %817
    %v819 = vsel %vm809, %v804, -inf
    %820 = vmax.xlane.f32.xlu0 %v819
    %v821 = vpop.xlane.xlu0 %820
    %v822 = vsel %vm809, %v805, -inf
    %823 = vmax.xlane.f32.xlu0 %v822
    %v824 = vpop.xlane.xlu0 %823
    %v825 = vsel %vm809, %v806, -inf
    %826 = vmax.xlane.f32.xlu0 %v825
    %v827 = vpop.xlane.xlu0 %826
    %v828 = vsel %vm809, %v807, -inf
    %829 = vmax.xlane.f32.xlu0 %v828
    %v830 = vpop.xlane.xlu0 %829
    %v831 = vsel %vm809, %v808, -inf
    %832 = vmax.xlane.f32.xlu0 %v831
    %v833 = vpop.xlane.xlu0 %832
    %v834 = vsub.f32 %v801, %v812
    %v835 = vsub.f32 %v802, %v815
    %v836 = vsub.f32 %v803, %v818
    %v837 = vsub.f32 %v804, %v821
    %v838 = vsub.f32 %v805, %v824
    %v839 = vsub.f32 %v806, %v827
    %v840 = vsub.f32 %v807, %v830
    %v841 = vsub.f32 %v808, %v833
    %v842 = vmul.f32 %v834, 1.442695
    %v843 = vpow.pop %v842
    %v844 = vmul.f32 %v835, 1.442695
    %v845 = vpow.pop %v844
    %v846 = vmul.f32 %v836, 1.442695
    %v847 = vpow.pop %v846
    %v848 = vmul.f32 %v837, 1.442695
    %v849 = vpow.pop %v848
    %v850 = vmul.f32 %v838, 1.442695
    %v851 = vpow.pop %v850
    %v852 = vmul.f32 %v839, 1.442695
    %v853 = vpow.pop %v852
    %v854 = vmul.f32 %v840, 1.442695
    %v855 = vpow.pop %v854
    %v856 = vmul.f32 %v841, 1.442695
    %v857 = vpow.pop %v856
    %v858 = vsel %vm809, %v843, 0.0
    %859 = vadd.xlane.f32.xlu0 %v858
    %v860 = vpop.xlane.xlu0 %859
    %v861 = vsel %vm809, %v845, 0.0
    %862 = vadd.xlane.f32.xlu0 %v861
    %v863 = vpop.xlane.xlu0 %862
    %v864 = vsel %vm809, %v847, 0.0
    %865 = vadd.xlane.f32.xlu0 %v864
    %v866 = vpop.xlane.xlu0 %865
    %v867 = vsel %vm809, %v849, 0.0
    %868 = vadd.xlane.f32.xlu0 %v867
    %v869 = vpop.xlane.xlu0 %868
    %v870 = vsel %vm809, %v851, 0.0
    %871 = vadd.xlane.f32.xlu0 %v870
    %v872 = vpop.xlane.xlu0 %871
    %v873 = vsel %vm809, %v853, 0.0
    %874 = vadd.xlane.f32.xlu0 %v873
    %v875 = vpop.xlane.xlu0 %874
    %v876 = vsel %vm809, %v855, 0.0
    %877 = vadd.xlane.f32.xlu0 %v876
    %v878 = vpop.xlane.xlu0 %877
    %v879 = vsel %vm809, %v857, 0.0
    %880 = vadd.xlane.f32.xlu0 %v879
    %v881 = vpop.xlane.xlu0 %880
    %v882 = vrcp.pop %v860
    %v883 = vrcp.pop %v863
    %v884 = vrcp.pop %v866
    %v885 = vrcp.pop %v869
    %v886 = vrcp.pop %v872
    %v887 = vrcp.pop %v875
    %v888 = vrcp.pop %v878
    %v889 = vrcp.pop %v881
    %v890 = vmul.f32 %v843, %v882
    %v891 = vmul.f32 %v845, %v883
    %v892 = vmul.f32 %v847, %v884
    %v893 = vmul.f32 %v849, %v885
    %v894 = vmul.f32 %v851, %v886
    %v895 = vmul.f32 %v853, %v887
    %v896 = vmul.f32 %v855, %v888
    %v897 = vmul.f32 %v857, %v889
    %v898 = vsub.f32 1.0, %v694
    %v899 = vsub.f32 1.0, %v696
    %v900 = vsub.f32 1.0, %v698
    %v901 = vsub.f32 1.0, %v700
    %v902 = vsub.f32 1.0, %v702
    %v903 = vsub.f32 1.0, %v704
    %v904 = vsub.f32 1.0, %v706
    %v905 = vsub.f32 1.0, %v708
    %907 = vset.pattern.permute.xlu0 32
    %908 = vperm.xlu0 %907, %v898
    %v909 = vpop.permute.xlu0 %908
    %912 = vset.pattern.permute.xlu0 32
    %913 = vperm.xlu0 %912, %v899
    %v914 = vpop.permute.xlu0 %913
    %917 = vset.pattern.permute.xlu0 32
    %918 = vperm.xlu0 %917, %v900
    %v919 = vpop.permute.xlu0 %918
    %922 = vset.pattern.permute.xlu0 32
    %923 = vperm.xlu0 %922, %v901
    %v924 = vpop.permute.xlu0 %923
    %927 = vset.pattern.permute.xlu0 32
    %928 = vperm.xlu0 %927, %v902
    %v929 = vpop.permute.xlu0 %928
    %932 = vset.pattern.permute.xlu0 32
    %933 = vperm.xlu0 %932, %v903
    %v934 = vpop.permute.xlu0 %933
    %937 = vset.pattern.permute.xlu0 32
    %938 = vperm.xlu0 %937, %v904
    %v939 = vpop.permute.xlu0 %938
    %942 = vset.pattern.permute.xlu0 32
    %943 = vperm.xlu0 %942, %v905
    %v944 = vpop.permute.xlu0 %943
    %v946 = vlaneseq
    %v947 = vshrl.u32 %v946, 7
    %v948 = vsub.s32 0, %v947
    %v949 = vrot.slane %v244, %v948
    %v950 = vmul.f32 %v909, %v949
    %v951 = vmul.f32 %v914, %v949
    %v952 = vmul.f32 %v919, %v949
    %v953 = vmul.f32 %v924, %v949
    %v954 = vmul.f32 %v929, %v949
    %v955 = vmul.f32 %v934, %v949
    %v956 = vmul.f32 %v939, %v949
    %v957 = vmul.f32 %v944, %v949
    %v958 = vpack.c.bf16 %v891, %v890
    %v959 = vpack.c.bf16 %v893, %v892
    %v960 = vpack.c.bf16 %v895, %v894
    %v961 = vpack.c.bf16 %v897, %v896
    %v963 = vsel %vm809, %v958, 0
    %v966 = vsel %vm809, %v959, 0
    %v969 = vsel %vm809, %v960, 0
    %v972 = vsel %vm809, %v961, 0
    %vm974 = vcmask 1043456
    %v975 = vsel %vm974, %v720, 0
    %977 = vmatprep.subr.bf16.mxu0 0
    %978 = vmatpush1.bf16.msra.mxu0 0
    %979 = vmatprep.subr.bf16.mxu0 0
    %980 = vmatpush1.bf16.msra.mxu0 0
    %981 = vmatprep.subr.bf16.mxu0 0
    %982 = vmatpush1.bf16.msra.mxu0 0
    %983 = vmatprep.subr.bf16.mxu0 0
    %984 = vmatpush1.bf16.msra.mxu0 0
    %985 = vmatprep.subr.bf16.mxu0 0
    %986 = vmatpush1.bf16.msra.mxu0 0
    %987 = vmatprep.subr.bf16.mxu0 0
    %988 = vmatpush1.bf16.msra.mxu0 0
    %989 = vmatprep.subr.bf16.mxu0 0
    %990 = vmatpush1.bf16.msra.mxu0 0
    %991 = vmatprep.subr.bf16.mxu0 0
    %992 = vmatpush1.bf16.msra.mxu0 %v975
    %993 = vmatprep.subr.bf16.mxu0 0
    %994 = vmatpush2.bf16.msra.mxu0 0
    %995 = vmatprep.subr.bf16.mxu0 0
    %996 = vmatpush2.bf16.msra.mxu0 0
    %997 = vmatprep.subr.bf16.mxu0 0
    %998 = vmatpush2.bf16.msra.mxu0 0
    %999 = vmatprep.subr.bf16.mxu0 0
    %1000 = vmatpush2.bf16.msra.mxu0 0
    %1001 = vmatprep.subr.bf16.mxu0 0
    %1002 = vmatpush2.bf16.msra.mxu0 0
    %1003 = vmatprep.subr.bf16.mxu0 0
    %1004 = vmatpush2.bf16.msra.mxu0 0
    %1005 = vmatprep.subr.bf16.mxu0 0
    %1006 = vmatpush2.bf16.msra.mxu0 0
    %1007 = vmatprep.subr.bf16.mxu0 0
    %1008 = vmatpush2.bf16.msra.mxu0 0
    %1009 = vmatprep.mubr.bf16.mxu0 0
    %1010 = vmatmul.mubr.bf16.gmra.mxu0 %v963
    %v1011 = vpop.f32.mrf.mxu0
    %v1012 = vadd.f32 0.0, %v1011
    %v1013 = vpop.f32.mrf.mxu0
    %v1014 = vpop.f32.mrf.mxu0
    %v1015 = vadd.f32 0.0, %v1014
    %v1016 = vpop.f32.mrf.mxu0
    %1017 = vmatprep.mubr.bf16.mxu0 0
    %1018 = vmatmul.mubr.bf16.gmra.mxu0 %v966
    %v1019 = vpop.f32.mrf.mxu0
    %v1020 = vadd.f32 0.0, %v1019
    %v1021 = vpop.f32.mrf.mxu0
    %v1022 = vpop.f32.mrf.mxu0
    %v1023 = vadd.f32 0.0, %v1022
    %v1024 = vpop.f32.mrf.mxu0
    %1025 = vmatprep.mubr.bf16.mxu0 0
    %1026 = vmatmul.mubr.bf16.gmra.mxu0 %v969
    %v1027 = vpop.f32.mrf.mxu0
    %v1028 = vadd.f32 0.0, %v1027
    %v1029 = vpop.f32.mrf.mxu0
    %v1030 = vpop.f32.mrf.mxu0
    %v1031 = vadd.f32 0.0, %v1030
    %v1032 = vpop.f32.mrf.mxu0
    %1033 = vmatprep.mubr.bf16.mxu0 0
    %1034 = vmatmul.mubr.bf16.gmra.mxu0 %v972
    %v1035 = vpop.f32.mrf.mxu0
    %v1036 = vadd.f32 0.0, %v1035
    %v1037 = vpop.f32.mrf.mxu0
    %v1038 = vpop.f32.mrf.mxu0
    %v1039 = vadd.f32 0.0, %v1038
    %v1040 = vpop.f32.mrf.mxu0
    %1041 = vdwg.mxu0
    %1043 = vset.pattern.permute.xlu0 32
    %1044 = vperm.xlu0 %1043, %v694
    %v1045 = vpop.permute.xlu0 %1044
    %1048 = vset.pattern.permute.xlu0 32
    %1049 = vperm.xlu0 %1048, %v696
    %v1050 = vpop.permute.xlu0 %1049
    %1053 = vset.pattern.permute.xlu0 32
    %1054 = vperm.xlu0 %1053, %v698
    %v1055 = vpop.permute.xlu0 %1054
    %1058 = vset.pattern.permute.xlu0 32
    %1059 = vperm.xlu0 %1058, %v700
    %v1060 = vpop.permute.xlu0 %1059
    %1063 = vset.pattern.permute.xlu0 32
    %1064 = vperm.xlu0 %1063, %v702
    %v1065 = vpop.permute.xlu0 %1064
    %1068 = vset.pattern.permute.xlu0 32
    %1069 = vperm.xlu0 %1068, %v704
    %v1070 = vpop.permute.xlu0 %1069
    %1073 = vset.pattern.permute.xlu0 32
    %1074 = vperm.xlu0 %1073, %v706
    %v1075 = vpop.permute.xlu0 %1074
    %1078 = vset.pattern.permute.xlu0 32
    %1079 = vperm.xlu0 %1078, %v708
    %v1080 = vpop.permute.xlu0 %1079
    %v1082 = vmul.f32 %v1045, %v1012
    %v1083 = vmul.f32 %v1050, %v1015
    %v1084 = vmul.f32 %v1055, %v1020
    %v1085 = vmul.f32 %v1060, %v1023
    %v1086 = vmul.f32 %v1065, %v1028
    %v1087 = vmul.f32 %v1070, %v1031
    %v1088 = vmul.f32 %v1075, %v1036
    %v1089 = vmul.f32 %v1080, %v1039
    %v1090 = vadd.f32 %v950, %v1082
    %v1091 = vadd.f32 %v951, %v1083
    %v1092 = vadd.f32 %v952, %v1084
    %v1093 = vadd.f32 %v953, %v1085
    %v1094 = vadd.f32 %v954, %v1086
    %v1095 = vadd.f32 %v955, %v1087
    %v1096 = vadd.f32 %v956, %v1088
    %v1097 = vadd.f32 %v957, %v1089
    %v1098 = vmul.f32 %v694, %v694
    %v1099 = vmul.f32 %v696, %v696
    %v1100 = vmul.f32 %v698, %v698
    %v1101 = vmul.f32 %v700, %v700
    %v1102 = vmul.f32 %v702, %v702
    %v1103 = vmul.f32 %v704, %v704
    %v1104 = vmul.f32 %v706, %v706
    %v1105 = vmul.f32 %v708, %v708
    %vm1106 = vcmask 269568
    %v1107 = vsel %vm1106, %v1098, 0.0
    %v1108 = vrot.slane %v1107, 4
    %v1109 = vadd.f32 %v1107, %v1108
    %v1110 = vrot.slane %v1109, 2
    %v1111 = vadd.f32 %v1109, %v1110
    %v1112 = vrot.slane %v1111, 1
    %v1113 = vadd.f32 %v1111, %v1112
    %v1114 = vsel %vm1106, %v1099, 0.0
    %v1115 = vrot.slane %v1114, 4
    %v1116 = vadd.f32 %v1114, %v1115
    %v1117 = vrot.slane %v1116, 2
    %v1118 = vadd.f32 %v1116, %v1117
    %v1119 = vrot.slane %v1118, 1
    %v1120 = vadd.f32 %v1118, %v1119
    %v1121 = vsel %vm1106, %v1100, 0.0
    %v1122 = vrot.slane %v1121, 4
    %v1123 = vadd.f32 %v1121, %v1122
    %v1124 = vrot.slane %v1123, 2
    %v1125 = vadd.f32 %v1123, %v1124
    %v1126 = vrot.slane %v1125, 1
    %v1127 = vadd.f32 %v1125, %v1126
    %v1128 = vsel %vm1106, %v1101, 0.0
    %v1129 = vrot.slane %v1128, 4
    %v1130 = vadd.f32 %v1128, %v1129
    %v1131 = vrot.slane %v1130, 2
    %v1132 = vadd.f32 %v1130, %v1131
    %v1133 = vrot.slane %v1132, 1
    %v1134 = vadd.f32 %v1132, %v1133
    %v1135 = vsel %vm1106, %v1102, 0.0
    %v1136 = vrot.slane %v1135, 4
    %v1137 = vadd.f32 %v1135, %v1136
    %v1138 = vrot.slane %v1137, 2
    %v1139 = vadd.f32 %v1137, %v1138
    %v1140 = vrot.slane %v1139, 1
    %v1141 = vadd.f32 %v1139, %v1140
    %v1142 = vsel %vm1106, %v1103, 0.0
    %v1143 = vrot.slane %v1142, 4
    %v1144 = vadd.f32 %v1142, %v1143
    %v1145 = vrot.slane %v1144, 2
    %v1146 = vadd.f32 %v1144, %v1145
    %v1147 = vrot.slane %v1146, 1
    %v1148 = vadd.f32 %v1146, %v1147
    %v1149 = vsel %vm1106, %v1104, 0.0
    %v1150 = vrot.slane %v1149, 4
    %v1151 = vadd.f32 %v1149, %v1150
    %v1152 = vrot.slane %v1151, 2
    %v1153 = vadd.f32 %v1151, %v1152
    %v1154 = vrot.slane %v1153, 1
    %v1155 = vadd.f32 %v1153, %v1154
    %v1156 = vsel %vm1106, %v1105, 0.0
    %v1157 = vrot.slane %v1156, 4
    %v1158 = vadd.f32 %v1156, %v1157
    %v1159 = vrot.slane %v1158, 2
    %v1160 = vadd.f32 %v1158, %v1159
    %v1161 = vrot.slane %v1160, 1
    %v1162 = vadd.f32 %v1160, %v1161
    %v1163 = vmax.f32 %v1113, 1e-24
    %v1164 = vmax.f32 %v1120, 1e-24
    %v1165 = vmax.f32 %v1127, 1e-24
    %v1166 = vmax.f32 %v1134, 1e-24
    %v1167 = vmax.f32 %v1141, 1e-24
    %v1168 = vmax.f32 %v1148, 1e-24
    %v1169 = vmax.f32 %v1155, 1e-24
    %v1170 = vmax.f32 %v1162, 1e-24
    %v1171 = vrsqrt.pop %v1163
    %v1172 = vrsqrt.pop %v1164
    %v1173 = vrsqrt.pop %v1165
    %v1174 = vrsqrt.pop %v1166
    %v1175 = vrsqrt.pop %v1167
    %v1176 = vrsqrt.pop %v1168
    %v1177 = vrsqrt.pop %v1169
    %v1178 = vrsqrt.pop %v1170
    %v1179 = vmul.f32 %v694, %v1171
    %v1180 = vmul.f32 %v696, %v1172
    %v1181 = vmul.f32 %v698, %v1173
    %v1182 = vmul.f32 %v700, %v1174
    %v1183 = vmul.f32 %v702, %v1175
    %v1184 = vmul.f32 %v704, %v1176
    %v1185 = vmul.f32 %v706, %v1177
    %v1186 = vmul.f32 %v708, %v1178
    %v1187 = vmul.f32 %v1179, %v259
    %v1188 = vmul.f32 %v1180, %v266
    %v1189 = vmul.f32 %v1181, %v273
    %v1190 = vmul.f32 %v1182, %v280
    %v1191 = vmul.f32 %v1183, %v287
    %v1192 = vmul.f32 %v1184, %v294
    %v1193 = vmul.f32 %v1185, %v301
    %v1194 = vmul.f32 %v1186, %v308
    %v1195 = vld [vmem:[#allocation7 + $0x70] sm:$0xf]
    %v1196 = vld [vmem:[#allocation7 + $0x74] sm:$0xf]
    %v1197 = vld [vmem:[#allocation7 + $0x78] sm:$0xf]
    %v1198 = vld [vmem:[#allocation7 + $0x7c] sm:$0xf]
    %v1203 = vunpack.c.l.b16 %v1195
    %v1204 = vunpack.c.l.b16 %v1196
    %v1205 = vunpack.c.l.b16 %v1197
    %v1206 = vunpack.c.l.b16 %v1198
    %v1207 = vpack.c.b16 %v1204, %v1203
    %v1208 = vpack.c.b16 %v1206, %v1205
    %1211 = vmatprep.subr.bf16.mxu0 0
    %1212 = vmatpush1.bf16.msra.mxu0 0
    %1213 = vmatprep.subr.bf16.mxu0 0
    %1214 = vmatpush1.bf16.msra.mxu0 0
    %1215 = vmatprep.subr.bf16.mxu0 0
    %1216 = vmatpush1.bf16.msra.mxu0 0
    %1217 = vmatprep.subr.bf16.mxu0 0
    %1218 = vmatpush1.bf16.msra.mxu0 0
    %1219 = vmatprep.subr.bf16.mxu0 0
    %1220 = vmatpush1.bf16.msra.mxu0 0
    %1221 = vmatprep.subr.bf16.mxu0 0
    %1222 = vmatpush1.bf16.msra.mxu0 0
    %1223 = vmatprep.subr.bf16.mxu0 0
    %1224 = vmatpush1.bf16.msra.mxu0 %v1208
    %1225 = vmatprep.subr.bf16.mxu0 0
    %1226 = vmatpush1.bf16.msra.mxu0 %v1207
    %1227 = vmatprep.subr.bf16.mxu0 0
    %1228 = vmatpush2.bf16.msra.mxu0 0
    %1229 = vmatprep.subr.bf16.mxu0 0
    %1230 = vmatpush2.bf16.msra.mxu0 0
    %1231 = vmatprep.subr.bf16.mxu0 0
    %1232 = vmatpush2.bf16.msra.mxu0 0
    %1233 = vmatprep.subr.bf16.mxu0 0
    %1234 = vmatpush2.bf16.msra.mxu0 0
    %1235 = vmatprep.subr.bf16.mxu0 0
    %1236 = vmatpush2.bf16.msra.mxu0 0
    %1237 = vmatprep.subr.bf16.mxu0 0
    %1238 = vmatpush2.bf16.msra.mxu0 0
    %1239 = vmatprep.subr.bf16.mxu0 0
    %1240 = vmatpush2.bf16.msra.mxu0 0
    %1241 = vmatprep.subr.bf16.mxu0 0
    %1242 = vmatpush2.bf16.msra.mxu0 0
    %1243 = vmatprep.mubr.bf16.mxu0 0
    %1244 = vmatmul.mubr.bf16.gmra.mxu0 %v326
    %v1245 = vpop.f32.mrf.mxu0
    %v1246 = vadd.f32 0.0, %v1245
    %v1247 = vpop.f32.mrf.mxu0
    %v1248 = vpop.f32.mrf.mxu0
    %v1249 = vpop.f32.mrf.mxu0
    %1250 = vdwg.mxu0
    %v1251 = vld [vmem:[#allocation7 + $0x80] sm:$0xf]
    %v1252 = vld [vmem:[#allocation7 + $0x84] sm:$0xf]
    %v1253 = vld [vmem:[#allocation7 + $0x88] sm:$0xf]
    %v1254 = vld [vmem:[#allocation7 + $0x8c] sm:$0xf]
    %v1255 = vpack.c.bf16 %v1091, %v1090
    %v1256 = vpack.c.bf16 %v1093, %v1092
    %v1257 = vpack.c.bf16 %v1095, %v1094
    %v1258 = vpack.c.bf16 %v1097, %v1096
    %v1263 = vunpack.c.l.b16 %v1251
    %v1264 = vunpack.c.l.b16 %v1252
    %v1265 = vunpack.c.l.b16 %v1253
    %v1266 = vunpack.c.l.b16 %v1254
    %v1267 = vpack.c.b16 %v1264, %v1263
    %v1268 = vpack.c.b16 %v1266, %v1265
    %v1272 = vsel %vm186, %v1255, 0
    %v1275 = vsel %vm186, %v1256, 0
    %v1278 = vsel %vm186, %v1257, 0
    %v1281 = vsel %vm186, %v1258, 0
    %1283 = vmatprep.subr.bf16.mxu0 0
    %1284 = vmatpush1.bf16.msra.mxu0 0
    %1285 = vmatprep.subr.bf16.mxu0 0
    %1286 = vmatpush1.bf16.msra.mxu0 0
    %1287 = vmatprep.subr.bf16.mxu0 0
    %1288 = vmatpush1.bf16.msra.mxu0 0
    %1289 = vmatprep.subr.bf16.mxu0 0
    %1290 = vmatpush1.bf16.msra.mxu0 0
    %1291 = vmatprep.subr.bf16.mxu0 0
    %1292 = vmatpush1.bf16.msra.mxu0 0
    %1293 = vmatprep.subr.bf16.mxu0 0
    %1294 = vmatpush1.bf16.msra.mxu0 0
    %1295 = vmatprep.subr.bf16.mxu0 0
    %1296 = vmatpush1.bf16.msra.mxu0 %v1268
    %1297 = vmatprep.subr.bf16.mxu0 0
    %1298 = vmatpush1.bf16.msra.mxu0 %v1267
    %1299 = vmatprep.subr.bf16.mxu0 0
    %1300 = vmatpush2.bf16.msra.mxu0 0
    %1301 = vmatprep.subr.bf16.mxu0 0
    %1302 = vmatpush2.bf16.msra.mxu0 0
    %1303 = vmatprep.subr.bf16.mxu0 0
    %1304 = vmatpush2.bf16.msra.mxu0 0
    %1305 = vmatprep.subr.bf16.mxu0 0
    %1306 = vmatpush2.bf16.msra.mxu0 0
    %1307 = vmatprep.subr.bf16.mxu0 0
    %1308 = vmatpush2.bf16.msra.mxu0 0
    %1309 = vmatprep.subr.bf16.mxu0 0
    %1310 = vmatpush2.bf16.msra.mxu0 0
    %1311 = vmatprep.subr.bf16.mxu0 0
    %1312 = vmatpush2.bf16.msra.mxu0 0
    %1313 = vmatprep.subr.bf16.mxu0 0
    %1314 = vmatpush2.bf16.msra.mxu0 0
    %1315 = vmatprep.mubr.bf16.mxu0 0
    %1316 = vmatmul.mubr.bf16.gmra.mxu0 %v1272
    %v1317 = vpop.f32.mrf.mxu0
    %v1318 = vadd.f32 0.0, %v1317
    %v1319 = vpop.f32.mrf.mxu0
    %v1320 = vpop.f32.mrf.mxu0
    %v1321 = vadd.f32 0.0, %v1320
    %v1322 = vpop.f32.mrf.mxu0
    %1323 = vmatprep.mubr.bf16.mxu0 0
    %1324 = vmatmul.mubr.bf16.gmra.mxu0 %v1275
    %v1325 = vpop.f32.mrf.mxu0
    %v1326 = vadd.f32 0.0, %v1325
    %v1327 = vpop.f32.mrf.mxu0
    %v1328 = vpop.f32.mrf.mxu0
    %v1329 = vadd.f32 0.0, %v1328
    %v1330 = vpop.f32.mrf.mxu0
    %1331 = vmatprep.mubr.bf16.mxu0 0
    %1332 = vmatmul.mubr.bf16.gmra.mxu0 %v1278
    %v1333 = vpop.f32.mrf.mxu0
    %v1334 = vadd.f32 0.0, %v1333
    %v1335 = vpop.f32.mrf.mxu0
    %v1336 = vpop.f32.mrf.mxu0
    %v1337 = vadd.f32 0.0, %v1336
    %v1338 = vpop.f32.mrf.mxu0
    %1339 = vmatprep.mubr.bf16.mxu0 0
    %1340 = vmatmul.mubr.bf16.gmra.mxu0 %v1281
    %v1341 = vpop.f32.mrf.mxu0
    %v1342 = vadd.f32 0.0, %v1341
    %v1343 = vpop.f32.mrf.mxu0
    %v1344 = vpop.f32.mrf.mxu0
    %v1345 = vadd.f32 0.0, %v1344
    %v1346 = vpop.f32.mrf.mxu0
    %1347 = vdwg.mxu0
    %v1348 = vadd.f32 %v1318, %v1246
    %v1349 = vadd.f32 %v1321, %v1246
    %v1350 = vadd.f32 %v1326, %v1246
    %v1351 = vadd.f32 %v1329, %v1246
    %v1352 = vadd.f32 %v1334, %v1246
    %v1353 = vadd.f32 %v1337, %v1246
    %v1354 = vadd.f32 %v1342, %v1246
    %v1355 = vadd.f32 %v1345, %v1246
    %v1356 = vld [vmem:[#allocation8 + $0x4] sm:$0x1]
    %v1357 = vlaneseq
    %v1358 = vshrl.u32 %v1357, 7
    %v1359 = vsub.s32 0, %v1358
    %v1360 = vrot.slane %v1356, %v1359
    %v1361 = vadd.f32 %v1348, %v1360
    %v1362 = vadd.f32 %v1349, %v1360
    %v1363 = vadd.f32 %v1350, %v1360
    %v1364 = vadd.f32 %v1351, %v1360
    %v1365 = vadd.f32 %v1352, %v1360
    %v1366 = vadd.f32 %v1353, %v1360
    %v1367 = vadd.f32 %v1354, %v1360
    %v1368 = vadd.f32 %v1355, %v1360
    %v1369 = vmax.f32 %v1361, 0.0
    %v1370 = vmax.f32 %v1362, 0.0
    %v1371 = vmax.f32 %v1363, 0.0
    %v1372 = vmax.f32 %v1364, 0.0
    %v1373 = vmax.f32 %v1365, 0.0
    %v1374 = vmax.f32 %v1366, 0.0
    %v1375 = vmax.f32 %v1367, 0.0
    %v1376 = vmax.f32 %v1368, 0.0
    %v1377 = vld [vmem:[#allocation7 + $0x90] sm:$0xf]
    %v1378 = vld [vmem:[#allocation7 + $0x94] sm:$0xf]
    %v1379 = vld [vmem:[#allocation7 + $0x98] sm:$0xf]
    %v1380 = vld [vmem:[#allocation7 + $0x9c] sm:$0xf]
    %v1381 = vld [vmem:[#allocation7 + $0xa0] sm:$0xf]
    %v1382 = vld [vmem:[#allocation7 + $0xa4] sm:$0xf]
    %v1383 = vld [vmem:[#allocation7 + $0xa8] sm:$0xf]
    %v1384 = vld [vmem:[#allocation7 + $0xac] sm:$0xf]
    %v1385 = vpack.c.bf16 %v1370, %v1369
    %v1386 = vpack.c.bf16 %v1372, %v1371
    %v1387 = vpack.c.bf16 %v1374, %v1373
    %v1388 = vpack.c.bf16 %v1376, %v1375
    %v1389 = vld [vmem:[#allocation8 + $0x5] sm:$0x1]
    %v1390 = vlaneseq
    %v1391 = vshrl.u32 %v1390, 7
    %v1392 = vsub.s32 0, %v1391
    %v1393 = vrot.slane %v1389, %v1392
    %v1402 = vunpack.c.l.b16 %v1377
    %v1403 = vunpack.c.l.b16 %v1378
    %v1404 = vunpack.c.l.b16 %v1379
    %v1405 = vunpack.c.l.b16 %v1380
    %v1406 = vunpack.c.l.b16 %v1381
    %v1407 = vunpack.c.l.b16 %v1382
    %v1408 = vunpack.c.l.b16 %v1383
    %v1409 = vunpack.c.l.b16 %v1384
    %v1410 = vpack.c.b16 %v1403, %v1402
    %v1411 = vpack.c.b16 %v1405, %v1404
    %v1412 = vpack.c.b16 %v1407, %v1406
    %v1413 = vpack.c.b16 %v1409, %v1408
    %v1419 = vsel %vm122, %v1385, 0
    %v1422 = vsel %vm122, %v1386, 0
    %v1425 = vsel %vm122, %v1387, 0
    %v1428 = vsel %vm122, %v1388, 0
    %1430 = vmatprep.subr.bf16.mxu0 0
    %1431 = vmatpush1.bf16.msra.mxu0 0
    %1432 = vmatprep.subr.bf16.mxu0 0
    %1433 = vmatpush1.bf16.msra.mxu0 0
    %1434 = vmatprep.subr.bf16.mxu0 0
    %1435 = vmatpush1.bf16.msra.mxu0 0
    %1436 = vmatprep.subr.bf16.mxu0 0
    %1437 = vmatpush1.bf16.msra.mxu0 0
    %1438 = vmatprep.subr.bf16.mxu0 0
    %1439 = vmatpush1.bf16.msra.mxu0 %v1413
    %1440 = vmatprep.subr.bf16.mxu0 0
    %1441 = vmatpush1.bf16.msra.mxu0 %v1412
    %1442 = vmatprep.subr.bf16.mxu0 0
    %1443 = vmatpush1.bf16.msra.mxu0 %v1411
    %1444 = vmatprep.subr.bf16.mxu0 0
    %1445 = vmatpush1.bf16.msra.mxu0 %v1410
    %1446 = vmatprep.subr.bf16.mxu0 0
    %1447 = vmatpush2.bf16.msra.mxu0 0
    %1448 = vmatprep.subr.bf16.mxu0 0
    %1449 = vmatpush2.bf16.msra.mxu0 0
    %1450 = vmatprep.subr.bf16.mxu0 0
    %1451 = vmatpush2.bf16.msra.mxu0 0
    %1452 = vmatprep.subr.bf16.mxu0 0
    %1453 = vmatpush2.bf16.msra.mxu0 0
    %1454 = vmatprep.subr.bf16.mxu0 0
    %1455 = vmatpush2.bf16.msra.mxu0 0
    %1456 = vmatprep.subr.bf16.mxu0 0
    %1457 = vmatpush2.bf16.msra.mxu0 0
    %1458 = vmatprep.subr.bf16.mxu0 0
    %1459 = vmatpush2.bf16.msra.mxu0 0
    %1460 = vmatprep.subr.bf16.mxu0 0
    %1461 = vmatpush2.bf16.msra.mxu0 0
    %1462 = vmatprep.mubr.bf16.mxu0 0
    %1463 = vmatmul.mubr.bf16.gmra.mxu0 %v1419
    %v1464 = vpop.f32.mrf.mxu0
    %v1465 = vadd.f32 %v1393, %v1464
    %v1466 = vpop.f32.mrf.mxu0
    %v1467 = vpop.f32.mrf.mxu0
    %v1468 = vadd.f32 %v1393, %v1467
    %v1469 = vpop.f32.mrf.mxu0
    %1470 = vmatprep.mubr.bf16.mxu0 0
    %1471 = vmatmul.mubr.bf16.gmra.mxu0 %v1422
    %v1472 = vpop.f32.mrf.mxu0
    %v1473 = vadd.f32 %v1393, %v1472
    %v1474 = vpop.f32.mrf.mxu0
    %v1475 = vpop.f32.mrf.mxu0
    %v1476 = vadd.f32 %v1393, %v1475
    %v1477 = vpop.f32.mrf.mxu0
    %1478 = vmatprep.mubr.bf16.mxu0 0
    %1479 = vmatmul.mubr.bf16.gmra.mxu0 %v1425
    %v1480 = vpop.f32.mrf.mxu0
    %v1481 = vadd.f32 %v1393, %v1480
    %v1482 = vpop.f32.mrf.mxu0
    %v1483 = vpop.f32.mrf.mxu0
    %v1484 = vadd.f32 %v1393, %v1483
    %v1485 = vpop.f32.mrf.mxu0
    %1486 = vmatprep.mubr.bf16.mxu0 0
    %1487 = vmatmul.mubr.bf16.gmra.mxu0 %v1428
    %v1488 = vpop.f32.mrf.mxu0
    %v1489 = vadd.f32 %v1393, %v1488
    %v1490 = vpop.f32.mrf.mxu0
    %v1491 = vpop.f32.mrf.mxu0
    %v1492 = vadd.f32 %v1393, %v1491
    %v1493 = vpop.f32.mrf.mxu0
    %1494 = vdwg.mxu0
    %1496 = vset.pattern.permute.xlu0 32
    %1497 = vperm.xlu0 %1496, %v1187
    %v1498 = vpop.permute.xlu0 %1497
    %1501 = vset.pattern.permute.xlu0 32
    %1502 = vperm.xlu0 %1501, %v1188
    %v1503 = vpop.permute.xlu0 %1502
    %1506 = vset.pattern.permute.xlu0 32
    %1507 = vperm.xlu0 %1506, %v1189
    %v1508 = vpop.permute.xlu0 %1507
    %1511 = vset.pattern.permute.xlu0 32
    %1512 = vperm.xlu0 %1511, %v1190
    %v1513 = vpop.permute.xlu0 %1512
    %1516 = vset.pattern.permute.xlu0 32
    %1517 = vperm.xlu0 %1516, %v1191
    %v1518 = vpop.permute.xlu0 %1517
    %1521 = vset.pattern.permute.xlu0 32
    %1522 = vperm.xlu0 %1521, %v1192
    %v1523 = vpop.permute.xlu0 %1522
    %1526 = vset.pattern.permute.xlu0 32
    %1527 = vperm.xlu0 %1526, %v1193
    %v1528 = vpop.permute.xlu0 %1527
    %1531 = vset.pattern.permute.xlu0 32
    %1532 = vperm.xlu0 %1531, %v1194
    %v1533 = vpop.permute.xlu0 %1532
    %v1535 = vmul.f32 %v1465, %v1498
    %v1536 = vmul.f32 %v1468, %v1503
    %v1537 = vmul.f32 %v1473, %v1508
    %v1538 = vmul.f32 %v1476, %v1513
    %v1539 = vmul.f32 %v1481, %v1518
    %v1540 = vmul.f32 %v1484, %v1523
    %v1541 = vmul.f32 %v1489, %v1528
    %v1542 = vmul.f32 %v1492, %v1533
    %v1543 = vsel %vm122, %v1535, 0.0
    %v1544 = vrot.slane %v1543, 4
    %v1545 = vadd.f32 %v1543, %v1544
    %v1546 = vrot.slane %v1545, 2
    %v1547 = vadd.f32 %v1545, %v1546
    %v1548 = vrot.slane %v1547, 1
    %v1549 = vadd.f32 %v1547, %v1548
    %v1550 = vsel %vm122, %v1536, 0.0
    %v1551 = vrot.slane %v1550, 4
    %v1552 = vadd.f32 %v1550, %v1551
    %v1553 = vrot.slane %v1552, 2
    %v1554 = vadd.f32 %v1552, %v1553
    %v1555 = vrot.slane %v1554, 1
    %v1556 = vadd.f32 %v1554, %v1555
    %v1557 = vsel %vm122, %v1537, 0.0
    %v1558 = vrot.slane %v1557, 4
    %v1559 = vadd.f32 %v1557, %v1558
    %v1560 = vrot.slane %v1559, 2
    %v1561 = vadd.f32 %v1559, %v1560
    %v1562 = vrot.slane %v1561, 1
    %v1563 = vadd.f32 %v1561, %v1562
    %v1564 = vsel %vm122, %v1538, 0.0
    %v1565 = vrot.slane %v1564, 4
    %v1566 = vadd.f32 %v1564, %v1565
    %v1567 = vrot.slane %v1566, 2
    %v1568 = vadd.f32 %v1566, %v1567
    %v1569 = vrot.slane %v1568, 1
    %v1570 = vadd.f32 %v1568, %v1569
    %v1571 = vsel %vm122, %v1539, 0.0
    %v1572 = vrot.slane %v1571, 4
    %v1573 = vadd.f32 %v1571, %v1572
    %v1574 = vrot.slane %v1573, 2
    %v1575 = vadd.f32 %v1573, %v1574
    %v1576 = vrot.slane %v1575, 1
    %v1577 = vadd.f32 %v1575, %v1576
    %v1578 = vsel %vm122, %v1540, 0.0
    %v1579 = vrot.slane %v1578, 4
    %v1580 = vadd.f32 %v1578, %v1579
    %v1581 = vrot.slane %v1580, 2
    %v1582 = vadd.f32 %v1580, %v1581
    %v1583 = vrot.slane %v1582, 1
    %v1584 = vadd.f32 %v1582, %v1583
    %v1585 = vsel %vm122, %v1541, 0.0
    %v1586 = vrot.slane %v1585, 4
    %v1587 = vadd.f32 %v1585, %v1586
    %v1588 = vrot.slane %v1587, 2
    %v1589 = vadd.f32 %v1587, %v1588
    %v1590 = vrot.slane %v1589, 1
    %v1591 = vadd.f32 %v1589, %v1590
    %v1592 = vsel %vm122, %v1542, 0.0
    %v1593 = vrot.slane %v1592, 4
    %v1594 = vadd.f32 %v1592, %v1593
    %v1595 = vrot.slane %v1594, 2
    %v1596 = vadd.f32 %v1594, %v1595
    %v1597 = vrot.slane %v1596, 1
    %v1598 = vadd.f32 %v1596, %v1597
    %v1599 = vadd.f32 %v1543, %v1550
    %v1600 = vadd.f32 %v1599, %v1557
    %v1601 = vadd.f32 %v1600, %v1564
    %v1602 = vadd.f32 %v1601, %v1571
    %v1603 = vadd.f32 %v1602, %v1578
    %v1604 = vadd.f32 %v1603, %v1585
    %v1605 = vadd.f32 %v1604, %v1592
    %v1607 = vrot.slane %v1605, 1
    %v1608 = vrot.slane %v1605, 2
    %v1609 = vrot.slane %v1605, 3
    %v1610 = vrot.slane %v1605, 4
    %v1611 = vrot.slane %v1605, 5
    %v1612 = vrot.slane %v1605, 6
    %v1613 = vrot.slane %v1605, 7
    %1614 = vrot.lane.b32.xlu0 %v1605, 96
    %v1615 = vpop.permute.xlu0 %1614
    %1616 = vrot.lane.b32.xlu0 %v1607, 96
    %v1617 = vpop.permute.xlu0 %1616
    %1618 = vrot.lane.b32.xlu0 %v1608, 96
    %v1619 = vpop.permute.xlu0 %1618
    %1620 = vrot.lane.b32.xlu0 %v1609, 96
    %v1621 = vpop.permute.xlu0 %1620
    %1622 = vrot.lane.b32.xlu0 %v1610, 96
    %v1623 = vpop.permute.xlu0 %1622
    %1624 = vrot.lane.b32.xlu0 %v1611, 96
    %v1625 = vpop.permute.xlu0 %1624
    %1626 = vrot.lane.b32.xlu0 %v1612, 96
    %v1627 = vpop.permute.xlu0 %1626
    %1628 = vrot.lane.b32.xlu0 %v1613, 96
    %v1629 = vpop.permute.xlu0 %1628
    %v1638 = vadd.f32 %v1549, %v1615
    %v1639 = vadd.f32 %v1556, %v1617
    %v1640 = vadd.f32 %v1563, %v1619
    %v1641 = vadd.f32 %v1570, %v1621
    %v1642 = vadd.f32 %v1577, %v1623
    %v1643 = vadd.f32 %v1584, %v1625
    %v1644 = vadd.f32 %v1591, %v1627
    %v1645 = vadd.f32 %v1598, %v1629
    %v1646 = vld [vmem:[#allocation7 + $0xb0] sm:$0xf]
    %v1647 = vld [vmem:[#allocation7 + $0xb4] sm:$0xf]
    %v1648 = vld [vmem:[#allocation7 + $0xb8] sm:$0xf]
    %v1649 = vld [vmem:[#allocation7 + $0xbc] sm:$0xf]
    %v1650 = vld [vmem:[#allocation7 + $0xc0] sm:$0xf]
    %v1651 = vld [vmem:[#allocation7 + $0xc4] sm:$0xf]
    %v1652 = vld [vmem:[#allocation7 + $0xc8] sm:$0xf]
    %v1653 = vld [vmem:[#allocation7 + $0xcc] sm:$0xf]
    %v1654 = vpack.c.bf16 %v1638, %v1638
    %v1655 = vpack.c.bf16 %v1639, %v1639
    %v1656 = vpack.c.bf16 %v1640, %v1640
    %v1657 = vpack.c.bf16 %v1641, %v1641
    %v1658 = vpack.c.bf16 %v1642, %v1642
    %v1659 = vpack.c.bf16 %v1643, %v1643
    %v1660 = vpack.c.bf16 %v1644, %v1644
    %v1661 = vpack.c.bf16 %v1645, %v1645
    %v1670 = vunpack.c.l.b16 %v1654
    %v1671 = vunpack.c.l.b16 %v1655
    %v1672 = vunpack.c.l.b16 %v1656
    %v1673 = vunpack.c.l.b16 %v1657
    %v1674 = vunpack.c.l.b16 %v1658
    %v1675 = vunpack.c.l.b16 %v1659
    %v1676 = vunpack.c.l.b16 %v1660
    %v1677 = vunpack.c.l.b16 %v1661
    %v1678 = vrot.slane %v1671, 7
    %vm1679 = vcmask 1041409
    %v1680 = vsel %vm1679, %v1678, %v1670
    %v1681 = vrot.slane %v1672, 6
    %vm1682 = vcmask 1042434
    %v1683 = vsel %vm1682, %v1681, %v1680
    %v1684 = vrot.slane %v1673, 5
    %vm1685 = vcmask 1043459
    %v1686 = vsel %vm1685, %v1684, %v1683
    %v1687 = vrot.slane %v1674, 4
    %vm1688 = vcmask 1044484
    %v1689 = vsel %vm1688, %v1687, %v1686
    %v1690 = vrot.slane %v1675, 3
    %vm1691 = vcmask 1045509
    %v1692 = vsel %vm1691, %v1690, %v1689
    %v1693 = vrot.slane %v1676, 2
    %vm1694 = vcmask 1046534
    %v1695 = vsel %vm1694, %v1693, %v1692
    %v1696 = vrot.slane %v1677, 1
    %vm1697 = vcmask 1047559
    %v1698 = vsel %vm1697, %v1696, %v1695
    %v1699 = vpack.c.b16 %v1698, %v1698
    %v1704 = vunpack.c.l.b16 %v1650
    %v1705 = vunpack.c.l.b16 %v1651
    %v1706 = vunpack.c.l.b16 %v1652
    %v1707 = vunpack.c.l.b16 %v1653
    %v1708 = vpack.c.b16 %v1705, %v1704
    %v1709 = vpack.c.b16 %v1707, %v1706
    %v1713 = vsel %vm186, %v1699, 0
    %1715 = vmatprep.subr.bf16.mxu0 0
    %1716 = vmatpush1.bf16.msra.mxu0 0
    %1717 = vmatprep.subr.bf16.mxu0 0
    %1718 = vmatpush1.bf16.msra.mxu0 0
    %1719 = vmatprep.subr.bf16.mxu0 0
    %1720 = vmatpush1.bf16.msra.mxu0 0
    %1721 = vmatprep.subr.bf16.mxu0 0
    %1722 = vmatpush1.bf16.msra.mxu0 0
    %1723 = vmatprep.subr.bf16.mxu0 0
    %1724 = vmatpush1.bf16.msra.mxu0 0
    %1725 = vmatprep.subr.bf16.mxu0 0
    %1726 = vmatpush1.bf16.msra.mxu0 0
    %1727 = vmatprep.subr.bf16.mxu0 0
    %1728 = vmatpush1.bf16.msra.mxu0 %v1709
    %1729 = vmatprep.subr.bf16.mxu0 0
    %1730 = vmatpush1.bf16.msra.mxu0 %v1708
    %1731 = vmatprep.subr.bf16.mxu0 0
    %1732 = vmatpush2.bf16.msra.mxu0 0
    %1733 = vmatprep.subr.bf16.mxu0 0
    %1734 = vmatpush2.bf16.msra.mxu0 0
    %1735 = vmatprep.subr.bf16.mxu0 0
    %1736 = vmatpush2.bf16.msra.mxu0 0
    %1737 = vmatprep.subr.bf16.mxu0 0
    %1738 = vmatpush2.bf16.msra.mxu0 0
    %1739 = vmatprep.subr.bf16.mxu0 0
    %1740 = vmatpush2.bf16.msra.mxu0 0
    %1741 = vmatprep.subr.bf16.mxu0 0
    %1742 = vmatpush2.bf16.msra.mxu0 0
    %1743 = vmatprep.subr.bf16.mxu0 0
    %1744 = vmatpush2.bf16.msra.mxu0 0
    %1745 = vmatprep.subr.bf16.mxu0 0
    %1746 = vmatpush2.bf16.msra.mxu0 0
    %1747 = vmatprep.mubr.bf16.mxu0 0
    %1748 = vmatmul.mubr.bf16.gmra.mxu0 %v1713
    %v1749 = vpop.f32.mrf.mxu0
    %v1750 = vadd.f32 0.0, %v1749
    %v1751 = vpop.f32.mrf.mxu0
    %v1752 = vpop.f32.mrf.mxu0
    %v1753 = vpop.f32.mrf.mxu0
    %1754 = vdwg.mxu0
    %v1759 = vunpack.c.l.b16 %v1646
    %v1760 = vunpack.c.l.b16 %v1647
    %v1761 = vunpack.c.l.b16 %v1648
    %v1762 = vunpack.c.l.b16 %v1649
    %v1763 = vpack.c.b16 %v1760, %v1759
    %v1764 = vpack.c.b16 %v1762, %v1761
    %1767 = vmatprep.subr.bf16.mxu0 0
    %1768 = vmatpush1.bf16.msra.mxu0 0
    %1769 = vmatprep.subr.bf16.mxu0 0
    %1770 = vmatpush1.bf16.msra.mxu0 0
    %1771 = vmatprep.subr.bf16.mxu0 0
    %1772 = vmatpush1.bf16.msra.mxu0 0
    %1773 = vmatprep.subr.bf16.mxu0 0
    %1774 = vmatpush1.bf16.msra.mxu0 0
    %1775 = vmatprep.subr.bf16.mxu0 0
    %1776 = vmatpush1.bf16.msra.mxu0 0
    %1777 = vmatprep.subr.bf16.mxu0 0
    %1778 = vmatpush1.bf16.msra.mxu0 0
    %1779 = vmatprep.subr.bf16.mxu0 0
    %1780 = vmatpush1.bf16.msra.mxu0 %v1764
    %1781 = vmatprep.subr.bf16.mxu0 0
    %1782 = vmatpush1.bf16.msra.mxu0 %v1763
    %1783 = vmatprep.subr.bf16.mxu0 0
    %1784 = vmatpush2.bf16.msra.mxu0 0
    %1785 = vmatprep.subr.bf16.mxu0 0
    %1786 = vmatpush2.bf16.msra.mxu0 0
    %1787 = vmatprep.subr.bf16.mxu0 0
    %1788 = vmatpush2.bf16.msra.mxu0 0
    %1789 = vmatprep.subr.bf16.mxu0 0
    %1790 = vmatpush2.bf16.msra.mxu0 0
    %1791 = vmatprep.subr.bf16.mxu0 0
    %1792 = vmatpush2.bf16.msra.mxu0 0
    %1793 = vmatprep.subr.bf16.mxu0 0
    %1794 = vmatpush2.bf16.msra.mxu0 0
    %1795 = vmatprep.subr.bf16.mxu0 0
    %1796 = vmatpush2.bf16.msra.mxu0 0
    %1797 = vmatprep.subr.bf16.mxu0 0
    %1798 = vmatpush2.bf16.msra.mxu0 0
    %1799 = vmatprep.mubr.bf16.mxu0 0
    %1800 = vmatmul.mubr.bf16.gmra.mxu0 %v326
    %v1801 = vpop.f32.mrf.mxu0
    %v1802 = vadd.f32 %v1750, %v1801
    %v1803 = vpop.f32.mrf.mxu0
    %v1804 = vpop.f32.mrf.mxu0
    %v1805 = vpop.f32.mrf.mxu0
    %1806 = vdwg.mxu0
    %v1807 = vld [vmem:[#allocation8 + $0x6] sm:$0x1]
    %v1808 = vlaneseq
    %v1809 = vshrl.u32 %v1808, 7
    %v1810 = vsub.s32 0, %v1809
    %v1811 = vrot.slane %v1807, %v1810
    %v1812 = vadd.f32 %v1802, %v1811
    %v1813 = vxor.u32 %v1812, 2147483648
    %v1814 = vmul.f32 %v1813, 1.442695
    %v1815 = vpow.pop %v1814
    %v1816 = vadd.f32 %v1815, 1.0
    %v1817 = vrcp.pop %v1816
    %v1818 = vmul.f32 1.0, %v1817
    %1820 = vrot.lane.b32.xlu0 %v1812, 32
    %v1821 = vpop.permute.xlu0 %1820
    %v1823 = vmul.f32 %v1818, %v1821
    %1825 = vrot.lane.b32.xlu0 %v1823, 64
    %v1826 = vpop.permute.xlu0 %1825
    %v1828 = vadd.f32 %v1812, %v1826
    %v1829 = vtanh.pop %v1828
    %v1830 = vsub.f32 1.0, %v1818
    %1832 = vrot.lane.b32.xlu0 %v1829, 96
    %v1833 = vpop.permute.xlu0 %1832
    %v1835 = vmul.f32 %v1830, %v1833
    %v1844 = vrot.slane %v1639, 7
    %v1845 = vsel %vm1679, %v1844, %v1638
    %v1846 = vrot.slane %v1640, 6
    %v1847 = vsel %vm1682, %v1846, %v1845
    %v1848 = vrot.slane %v1641, 5
    %v1849 = vsel %vm1685, %v1848, %v1847
    %v1850 = vrot.slane %v1642, 4
    %v1851 = vsel %vm1688, %v1850, %v1849
    %v1852 = vrot.slane %v1643, 3
    %v1853 = vsel %vm1691, %v1852, %v1851
    %v1854 = vrot.slane %v1644, 2
    %v1855 = vsel %vm1694, %v1854, %v1853
    %v1856 = vrot.slane %v1645, 1
    %v1857 = vsel %vm1697, %v1856, %v1855
    %1858 = vrot.lane.b32.xlu0 %v1857, 32
    %v1859 = vpop.permute.xlu0 %1858
    %v1861 = vmul.f32 %v1818, %v1859
    %v1862 = vadd.f32 %v1835, %v1861
    %1864 = vrot.lane.b32.xlu0 %v1862, 96
    %v1865 = vpop.permute.xlu0 %1864
    %1867 = vst.msk [vmem:[#allocation11] sm:$0xff] %vm186, %v1865
    %v1868 = vld [vmem:[#allocation7 + $0xd0] sm:$0xf]
    %v1869 = vld [vmem:[#allocation7 + $0xd4] sm:$0xf]
    %v1870 = vld [vmem:[#allocation7 + $0xd8] sm:$0xf]
    %v1871 = vld [vmem:[#allocation7 + $0xdc] sm:$0xf]
    %v1872 = vpack.c.bf16 %v1862, %v1862
    %v1873 = vld [vmem:[#allocation8 + $0x7] sm:$0x1]
    %v1874 = vlaneseq
    %v1875 = vshrl.u32 %v1874, 7
    %v1876 = vsub.s32 0, %v1875
    %v1877 = vrot.slane %v1873, %v1876
    %1879 = vrot.lane.b32.xlu0 %v1872, 96
    %v1880 = vpop.permute.xlu0 %1879
    %v1885 = vunpack.c.l.b16 %v1868
    %v1886 = vunpack.c.l.b16 %v1869
    %v1887 = vunpack.c.l.b16 %v1870
    %v1888 = vunpack.c.l.b16 %v1871
    %v1889 = vpack.c.b16 %v1886, %v1885
    %v1890 = vpack.c.b16 %v1888, %v1887
    %v1894 = vsel %vm186, %v1880, 0
    %1896 = vmatprep.subr.bf16.mxu0 0
    %1897 = vmatpush1.bf16.msra.mxu0 0
    %1898 = vmatprep.subr.bf16.mxu0 0
    %1899 = vmatpush1.bf16.msra.mxu0 0
    %1900 = vmatprep.subr.bf16.mxu0 0
    %1901 = vmatpush1.bf16.msra.mxu0 0
    %1902 = vmatprep.subr.bf16.mxu0 0
    %1903 = vmatpush1.bf16.msra.mxu0 0
    %1904 = vmatprep.subr.bf16.mxu0 0
    %1905 = vmatpush1.bf16.msra.mxu0 0
    %1906 = vmatprep.subr.bf16.mxu0 0
    %1907 = vmatpush1.bf16.msra.mxu0 0
    %1908 = vmatprep.subr.bf16.mxu0 0
    %1909 = vmatpush1.bf16.msra.mxu0 %v1890
    %1910 = vmatprep.subr.bf16.mxu0 0
    %1911 = vmatpush1.bf16.msra.mxu0 %v1889
    %1912 = vmatprep.subr.bf16.mxu0 0
    %1913 = vmatpush2.bf16.msra.mxu0 0
    %1914 = vmatprep.subr.bf16.mxu0 0
    %1915 = vmatpush2.bf16.msra.mxu0 0
    %1916 = vmatprep.subr.bf16.mxu0 0
    %1917 = vmatpush2.bf16.msra.mxu0 0
    %1918 = vmatprep.subr.bf16.mxu0 0
    %1919 = vmatpush2.bf16.msra.mxu0 0
    %1920 = vmatprep.subr.bf16.mxu0 0
    %1921 = vmatpush2.bf16.msra.mxu0 0
    %1922 = vmatprep.subr.bf16.mxu0 0
    %1923 = vmatpush2.bf16.msra.mxu0 0
    %1924 = vmatprep.subr.bf16.mxu0 0
    %1925 = vmatpush2.bf16.msra.mxu0 0
    %1926 = vmatprep.subr.bf16.mxu0 0
    %1927 = vmatpush2.bf16.msra.mxu0 0
    %1928 = vmatprep.mubr.bf16.mxu0 0
    %1929 = vmatmul.mubr.bf16.gmra.mxu0 %v1894
    %v1930 = vpop.f32.mrf.mxu0
    %v1931 = vadd.f32 %v1877, %v1930
    %v1932 = vpop.f32.mrf.mxu0
    %v1933 = vpop.f32.mrf.mxu0
    %v1934 = vpop.f32.mrf.mxu0
    %1935 = vdwg.mxu0
    %v1936 = vmax.f32 %v1931, 0.0
    %v1937 = vld [vmem:[#allocation7 + $0xe0] sm:$0xf]
    %v1938 = vld [vmem:[#allocation7 + $0xe4] sm:$0xf]
    %v1939 = vld [vmem:[#allocation7 + $0xe8] sm:$0xf]
    %v1940 = vld [vmem:[#allocation7 + $0xec] sm:$0xf]
    %v1941 = vpack.c.bf16 %v1936, %v1936
    %v1942 = vld [vmem:[#allocation8 + $0x8] sm:$0x1]
    %v1943 = vlaneseq
    %v1944 = vshrl.u32 %v1943, 7
    %v1945 = vsub.s32 0, %v1944
    %v1946 = vrot.slane %v1942, %v1945
    %v1951 = vunpack.c.l.b16 %v1937
    %v1952 = vunpack.c.l.b16 %v1938
    %v1953 = vunpack.c.l.b16 %v1939
    %v1954 = vunpack.c.l.b16 %v1940
    %v1955 = vpack.c.b16 %v1952, %v1951
    %v1956 = vpack.c.b16 %v1954, %v1953
    %v1960 = vsel %vm186, %v1941, 0
    %1962 = vmatprep.subr.bf16.mxu0 0
    %1963 = vmatpush1.bf16.msra.mxu0 0
    %1964 = vmatprep.subr.bf16.mxu0 0
    %1965 = vmatpush1.bf16.msra.mxu0 0
    %1966 = vmatprep.subr.bf16.mxu0 0
    %1967 = vmatpush1.bf16.msra.mxu0 0
    %1968 = vmatprep.subr.bf16.mxu0 0
    %1969 = vmatpush1.bf16.msra.mxu0 0
    %1970 = vmatprep.subr.bf16.mxu0 0
    %1971 = vmatpush1.bf16.msra.mxu0 0
    %1972 = vmatprep.subr.bf16.mxu0 0
    %1973 = vmatpush1.bf16.msra.mxu0 0
    %1974 = vmatprep.subr.bf16.mxu0 0
    %1975 = vmatpush1.bf16.msra.mxu0 %v1956
    %1976 = vmatprep.subr.bf16.mxu0 0
    %1977 = vmatpush1.bf16.msra.mxu0 %v1955
    %1978 = vmatprep.subr.bf16.mxu0 0
    %1979 = vmatpush2.bf16.msra.mxu0 0
    %1980 = vmatprep.subr.bf16.mxu0 0
    %1981 = vmatpush2.bf16.msra.mxu0 0
    %1982 = vmatprep.subr.bf16.mxu0 0
    %1983 = vmatpush2.bf16.msra.mxu0 0
    %1984 = vmatprep.subr.bf16.mxu0 0
    %1985 = vmatpush2.bf16.msra.mxu0 0
    %1986 = vmatprep.subr.bf16.mxu0 0
    %1987 = vmatpush2.bf16.msra.mxu0 0
    %1988 = vmatprep.subr.bf16.mxu0 0
    %1989 = vmatpush2.bf16.msra.mxu0 0
    %1990 = vmatprep.subr.bf16.mxu0 0
    %1991 = vmatpush2.bf16.msra.mxu0 0
    %1992 = vmatprep.subr.bf16.mxu0 0
    %1993 = vmatpush2.bf16.msra.mxu0 0
    %1994 = vmatprep.mubr.bf16.mxu0 0
    %1995 = vmatmul.mubr.bf16.gmra.mxu0 %v1960
    %v1996 = vpop.f32.mrf.mxu0
    %v1997 = vadd.f32 %v1946, %v1996
    %v1998 = vpop.f32.mrf.mxu0
    %v1999 = vpop.f32.mrf.mxu0
    %v2000 = vpop.f32.mrf.mxu0
    %2001 = vdwg.mxu0
    %v2002 = vmax.f32 %v1997, 0.0
    %v2003 = vld [vmem:[#allocation7 + $0xf0] sm:$0xf]
    %v2004 = vld [vmem:[#allocation7 + $0xf4] sm:$0xf]
    %v2005 = vld [vmem:[#allocation7 + $0xf8] sm:$0xf]
    %v2006 = vld [vmem:[#allocation7 + $0xfc] sm:$0xf]
    %v2007 = vpack.c.bf16 %v2002, %v2002
    %v2008 = vld [vmem:[#allocation8 + $0x9] sm:$0x1]
    %v2009 = vlaneseq
    %v2010 = vshrl.u32 %v2009, 7
    %v2011 = vsub.s32 0, %v2010
    %v2012 = vrot.slane %v2008, %v2011
    %v2017 = vunpack.c.l.b16 %v2003
    %v2018 = vunpack.c.l.b16 %v2004
    %v2019 = vunpack.c.l.b16 %v2005
    %v2020 = vunpack.c.l.b16 %v2006
    %v2021 = vpack.c.b16 %v2018, %v2017
    %v2022 = vpack.c.b16 %v2020, %v2019
    %v2026 = vsel %vm186, %v2007, 0
    %2028 = vmatprep.subr.bf16.mxu0 0
    %2029 = vmatpush1.bf16.msra.mxu0 0
    %2030 = vmatprep.subr.bf16.mxu0 0
    %2031 = vmatpush1.bf16.msra.mxu0 0
    %2032 = vmatprep.subr.bf16.mxu0 0
    %2033 = vmatpush1.bf16.msra.mxu0 0
    %2034 = vmatprep.subr.bf16.mxu0 0
    %2035 = vmatpush1.bf16.msra.mxu0 0
    %2036 = vmatprep.subr.bf16.mxu0 0
    %2037 = vmatpush1.bf16.msra.mxu0 0
    %2038 = vmatprep.subr.bf16.mxu0 0
    %2039 = vmatpush1.bf16.msra.mxu0 0
    %2040 = vmatprep.subr.bf16.mxu0 0
    %2041 = vmatpush1.bf16.msra.mxu0 %v2022
    %2042 = vmatprep.subr.bf16.mxu0 0
    %2043 = vmatpush1.bf16.msra.mxu0 %v2021
    %2044 = vmatprep.subr.bf16.mxu0 0
    %2045 = vmatpush2.bf16.msra.mxu0 0
    %2046 = vmatprep.subr.bf16.mxu0 0
    %2047 = vmatpush2.bf16.msra.mxu0 0
    %2048 = vmatprep.subr.bf16.mxu0 0
    %2049 = vmatpush2.bf16.msra.mxu0 0
    %2050 = vmatprep.subr.bf16.mxu0 0
    %2051 = vmatpush2.bf16.msra.mxu0 0
    %2052 = vmatprep.subr.bf16.mxu0 0
    %2053 = vmatpush2.bf16.msra.mxu0 0
    %2054 = vmatprep.subr.bf16.mxu0 0
    %2055 = vmatpush2.bf16.msra.mxu0 0
    %2056 = vmatprep.subr.bf16.mxu0 0
    %2057 = vmatpush2.bf16.msra.mxu0 0
    %2058 = vmatprep.subr.bf16.mxu0 0
    %2059 = vmatpush2.bf16.msra.mxu0 0
    %2060 = vmatprep.mubr.bf16.mxu0 0
    %2061 = vmatmul.mubr.bf16.gmra.mxu0 %v2026
    %v2062 = vpop.f32.mrf.mxu0
    %v2063 = vadd.f32 %v2012, %v2062
    %v2064 = vpop.f32.mrf.mxu0
    %v2065 = vpop.f32.mrf.mxu0
    %v2066 = vpop.f32.mrf.mxu0
    %2067 = vdwg.mxu0
    %v2068 = vxor.u32 %v2063, 2147483648
    %v2069 = vmul.f32 %v2068, 1.442695
    %v2070 = vpow.pop %v2069
    %v2071 = vadd.f32 %v2070, 1.0
    %v2072 = vrcp.pop %v2071
    %v2073 = vmul.f32 1.0, %v2072
    %vm2074 = vcmask 130048
    %2075 = vst.msk [vmem:[#allocation10] sm:$0xff] %vm2074, %v2073
    // Predicated region
    $region34: #{tpu_custom_call.1} parent=1 // pred_check
      _
    $region35: #{tpu_custom_call.1} parent=1 // pred_check_branch
      %2077 = sbr.rel (0) target = $region37
    $region36: #{tpu_custom_call.1} parent=1 // pred_region
      %s2079 = ssub.s32 128, 128
      %2080 = vsyncadd [#allocation4], %s2079
      %s2082 = sshll.u32 [#allocation10], 4
      %s2083 = int_to_ptr.vmem [resolvable:$true] %s2082
      %2085 = dma.vmem_to_hbm [thread:$0]  %s2083, 128, %s4, [#allocation4]
    $region37: #{tpu_custom_call.1} parent=1 // pred_fallthru
      _
    // Predicated region
    $region38: #{tpu_custom_call.1} parent=1 // pred_check
      _
    $region39: #{tpu_custom_call.1} parent=1 // pred_check_branch
      %2087 = sbr.rel (0) target = $region41
    $region40: #{tpu_custom_call.1} parent=1 // pred_region
      %s2089 = ssub.s32 128, 128
      %2090 = vsyncadd [#allocation12], %s2089
      %s2092 = sshll.u32 [#allocation11], 4
      %s2093 = int_to_ptr.vmem [resolvable:$true] %s2092
      %2095 = dma.vmem_to_hbm [thread:$0]  %s2093, 128, %s5, [#allocation12]
    $region41: #{tpu_custom_call.1} parent=1 // pred_fallthru
      _
    // Predicated region
    $region42: #{tpu_custom_call.1} parent=1 // pred_check
      _
    $region43: #{tpu_custom_call.1} parent=1 // pred_check_branch
      %2097 = sbr.rel (0) target = $region45
    $region44: #{tpu_custom_call.1} parent=1 // pred_region
      %2098 = dma.done [#allocation4], 128
    $region45: #{tpu_custom_call.1} parent=1 // pred_fallthru
      _
    // Predicated region
    $region46: #{tpu_custom_call.1} parent=1 // pred_check
      _
    $region47: #{tpu_custom_call.1} parent=1 // pred_check_branch
      %2100 = sbr.rel (0) target = $region49
    $region48: #{tpu_custom_call.1} parent=1 // pred_region
      %2101 = dma.done [#allocation12], 128
    $region49: #{tpu_custom_call.1} parent=1 // pred_fallthru
      _
    %2102 = vsyncpa [#allocation3], 1
    %2103 = vsyncpa [#allocation6], 1
    %2104 = vsyncpa [#allocation9], 1
    %2105 = vsyncpa [#allocation4], 1
    %2106 = vsyncpa [#allocation12], 1

</llo_original>
